<compile_context>
chip_gen: v7x
topology: tpu7x:2x2x1
jax: 0.10.0
libtpu: 0.0.40
codegen_flags: <defaults>
</compile_context>

<pallas_src>
import functools

import jax
import jax.numpy as jnp
from jax.experimental import pallas as pl
from jax.experimental.pallas import tpu as pltpu


# ---------------------------------------------------------------------------
# Fused kernel
# ---------------------------------------------------------------------------

def _mha_fused_kernel(xcat_ref, wqkv_ref, bqkv_ref, wo_ref, bo_ref,
                      out_ref, attnw_ref, *, batch, seq_q, seq_k,
                      num_heads, d_model):
    d_k = d_model // num_heads

    # One fused projection: block-diagonal weight computes [Q | K | V] in a
    # single MXU matmul. The 1/sqrt(d_k) scale is already folded into the
    # Q slice of the weight and bias by the wrapper.
    qkv = (jnp.dot(xcat_ref[...], wqkv_ref[...],
                   preferred_element_type=jnp.float32)
           + bqkv_ref[...])                                    # (B*S, 3*D)

    q = qkv[:, 0 * d_model:1 * d_model]                        # (B*Sq, D), pre-scaled
    k = qkv[:, 1 * d_model:2 * d_model]                        # (B*Sk, D)
    v = qkv[:, 2 * d_model:3 * d_model]                        # (B*Sk, D)

    attn_heads = []
    out_heads = []
    for h in range(num_heads):                                 # unrolled, H small
        sl = slice(h * d_k, (h + 1) * d_k)
        q_h = q[:, sl].reshape(batch, seq_q, d_k)
        k_h = k[:, sl].reshape(batch, seq_k, d_k)
        v_h = v[:, sl].reshape(batch, seq_k, d_k)

        # Contract d_k of both operands directly (no k.T materialization).
        scores = jnp.einsum("bqd,bkd->bqk", q_h, k_h,
                            preferred_element_type=jnp.float32)  # (B,Sq,Sk)

        m = jnp.max(scores, axis=-1, keepdims=True)
        e = jnp.exp(scores - m)
        denom = jnp.sum(e, axis=-1, keepdims=True)
        attn = e * pl.reciprocal(denom, approx=True)             # EUP reciprocal

        attn_heads.append(attn.reshape(batch * seq_q, seq_k))
        out_heads.append(
            jnp.einsum("bqk,bkd->bqd", attn, v_h,
                       preferred_element_type=jnp.float32))      # (B,Sq,d_k)

    # Single (lane-denser) store of all heads' attention weights: (B*Sq, H*Sk)
    # instead of H narrow masked slice stores.
    attnw_ref[...] = jnp.concatenate(attn_heads, axis=-1)

    attn_out = jnp.concatenate(out_heads, axis=-1)               # (B,Sq,D)
    attn_out = attn_out.reshape(batch * seq_q, d_model)

    out_ref[...] = (jnp.dot(attn_out, wo_ref[...],
                            preferred_element_type=jnp.float32)
                    + bo_ref[...])


# ---------------------------------------------------------------------------
# Wrapper
# ---------------------------------------------------------------------------

def multi_head_attention(params, query, key, value, num_heads):
    """query/key/value: (B, S, d_model).  Returns (output, attn_weights)."""
    B, Sq, d_model = query.shape
    Sk = key.shape[1]
    assert key.shape == value.shape
    assert key.shape[0] == B and key.shape[2] == d_model
    # Fused kernel concatenates q/k/v along features -> needs same (B, S).
    assert Sq == Sk, "fused kernel assumes q/k/v share sequence length"
    d_k = d_model // num_heads
    scale = 1.0 / jnp.sqrt(jnp.float32(d_k))

    # Concatenated input and block-diagonal QKV weight: one matmul does all
    # three projections; softmax scale folded into the Q weight/bias.
    x_cat = jnp.concatenate(
        [query.reshape(B * Sq, d_model),
         key.reshape(B * Sk, d_model),
         value.reshape(B * Sk, d_model)], axis=-1)              # (B*S, 3D)

    zeros = jnp.zeros((d_model, d_model), jnp.float32)
    w_qkv = jnp.concatenate([
        jnp.concatenate([params["wq"] * scale, zeros, zeros], axis=1),
        jnp.concatenate([zeros, params["wk"], zeros], axis=1),
        jnp.concatenate([zeros, zeros, params["wv"]], axis=1),
    ], axis=0)                                                  # (3D, 3D)
    b_qkv = jnp.concatenate(
        [params["bq"] * scale, params["bk"], params["bv"]]
    ).reshape(1, 3 * d_model)                                   # (1, 3D)
    wo = params["wo"]
    bo = params["bo"].reshape(1, d_model)

    kernel = functools.partial(
        _mha_fused_kernel, batch=B, seq_q=Sq, seq_k=Sk,
        num_heads=num_heads, d_model=d_model)

    out2d, attnw2d = pl.pallas_call(
        kernel,
        out_shape=(
            jax.ShapeDtypeStruct((B * Sq, d_model), jnp.float32),
            jax.ShapeDtypeStruct((B * Sq, num_heads * Sk), jnp.float32),
        ),
        grid_spec=pltpu.PrefetchScalarGridSpec(
            num_scalar_prefetch=0,
            grid=(1,),
            in_specs=[
                pl.BlockSpec((B * Sq, 3 * d_model), lambda i: (0, 0)),
                pl.BlockSpec((3 * d_model, 3 * d_model), lambda i: (0, 0)),
                pl.BlockSpec((1, 3 * d_model), lambda i: (0, 0)),
                pl.BlockSpec((d_model, d_model), lambda i: (0, 0)),
                pl.BlockSpec((1, d_model), lambda i: (0, 0)),
            ],
            out_specs=[
                pl.BlockSpec((B * Sq, d_model), lambda i: (0, 0)),
                pl.BlockSpec((B * Sq, num_heads * Sk), lambda i: (0, 0)),
            ],
        ),
        compiler_params=pltpu.CompilerParams(
            dimension_semantics=("arbitrary",)),
    )(x_cat, w_qkv, b_qkv, wo, bo)

    out = out2d.reshape(B, Sq, d_model)
    # Layout plumbing outside the kernel: (B*Sq, H*Sk) -> (B, H, Sq, Sk).
    attn_weights = attnw2d.reshape(B, Sq, num_heads, Sk).transpose(0, 2, 1, 3)
    # dropout == identity (eval mode)
    return out, attn_weights


# ---------------------------------------------------------------------------
# Parameter init (deterministic; weights stored pre-transposed as (d_in, d_out))
# ---------------------------------------------------------------------------

def init_params(key, d_model):
    ks = jax.random.split(key, 8)
    scale = 1.0 / jnp.sqrt(jnp.float32(d_model))

    def lin(kw, kb):
        w = jax.random.uniform(kw, (d_model, d_model), jnp.float32, -scale, scale)
        b = jax.random.uniform(kb, (d_model,), jnp.float32, -scale, scale)
        return w, b

    wq, bq = lin(ks[0], ks[1])
    wk, bk = lin(ks[2], ks[3])
    wv, bv = lin(ks[4], ks[5])
    wo, bo = lin(ks[6], ks[7])
    return dict(wq=wq, bq=bq, wk=wk, bk=bk, wv=wv, bv=bv, wo=wo, bo=bo)


if __name__ == "__main__":
    d_model = 32
    num_heads = 4
    B, S = 2, 8

    root = jax.random.PRNGKey(0)
    kp, kq, kk, kv = jax.random.split(root, 4)
    params = init_params(kp, d_model)

    query = jax.random.normal(kq, (B, S, d_model), jnp.float32)
    key = jax.random.normal(kk, (B, S, d_model), jnp.float32)
    value = jax.random.normal(kv, (B, S, d_model), jnp.float32)

    out, attn_weights = multi_head_attention(params, query, key, value, num_heads)
    jax.block_until_ready((out, attn_weights))

    # Sanity check against a pure-JAX reference (tolerance accounts for the
    # EUP approximate reciprocal used in the softmax normalization).
    def ref(params, q, k, v):
        d_k = d_model // num_heads

        def proj(x, w, b):
            y = x @ w + b
            return y.reshape(B, S, num_heads, d_k).transpose(0, 2, 1, 3)

        qh = proj(q, params["wq"], params["bq"])
        kh = proj(k, params["wk"], params["bk"])
        vh = proj(v, params["wv"], params["bv"])
        scores = jnp.einsum("bhqd,bhkd->bhqk", qh, kh) / jnp.sqrt(jnp.float32(d_k))
        w = jax.nn.softmax(scores, axis=-1)
        o = jnp.einsum("bhqk,bhkd->bhqd", w, vh)
        o = o.transpose(0, 2, 1, 3).reshape(B, S, d_model)
        return o @ params["wo"] + params["bo"], w

    out_ref, w_ref = ref(params, query, key, value)
    assert out.shape == (B, S, d_model)
    assert attn_weights.shape == (B, num_heads, S, S)
    assert jnp.allclose(out, out_ref, atol=5e-3, rtol=5e-3)
    assert jnp.allclose(attn_weights, w_ref, atol=5e-3, rtol=5e-3)

    print("KERNEL_OK")
</pallas_src>

<mosaic_0001>
module attributes {stable_mosaic.version = 11 : i64} {
  func.func @_mha_fused_kernel(%arg0: i32, %arg1: memref<16x96xf32, #tpu.memory_space<vmem>>, %arg2: memref<96x96xf32, #tpu.memory_space<vmem>>, %arg3: memref<1x96xf32, #tpu.memory_space<vmem>>, %arg4: memref<32x32xf32, #tpu.memory_space<vmem>>, %arg5: memref<1x32xf32, #tpu.memory_space<vmem>>, %arg6: memref<16x32xf32, #tpu.memory_space<vmem>>, %arg7: memref<16x32xf32, #tpu.memory_space<vmem>>) attributes {dimension_semantics = [#tpu.dimension_semantics<arbitrary>], iteration_bounds = array<i64: 1>, scalar_prefetch = 0 : i64, scratch_operands = 0 : i64, tpu.core_type = #tpu.core_type<tc>, window_params = [{pipeline_mode = #tpu.pipeline_mode<synchronous>, transform_indices = @transform_0, window_bounds = array<i64: 16, 96>}, {pipeline_mode = #tpu.pipeline_mode<synchronous>, transform_indices = @transform_1, window_bounds = array<i64: 96, 96>}, {pipeline_mode = #tpu.pipeline_mode<synchronous>, transform_indices = @transform_2, window_bounds = array<i64: 1, 96>}, {pipeline_mode = #tpu.pipeline_mode<synchronous>, transform_indices = @transform_3, window_bounds = array<i64: 32, 32>}, {pipeline_mode = #tpu.pipeline_mode<synchronous>, transform_indices = @transform_4, window_bounds = array<i64: 1, 32>}, {pipeline_mode = #tpu.pipeline_mode<synchronous>, transform_indices = @transform_5, window_bounds = array<i64: 16, 32>}, {pipeline_mode = #tpu.pipeline_mode<synchronous>, transform_indices = @transform_6, window_bounds = array<i64: 16, 32>}]} {
    %c0 = arith.constant 0 : index
    %c0_0 = arith.constant 0 : index
    %0 = vector.load %arg1[%c0, %c0_0] : memref<16x96xf32, #tpu.memory_space<vmem>>, vector<16x96xf32>
    %c0_1 = arith.constant 0 : index
    %c0_2 = arith.constant 0 : index
    %1 = vector.load %arg2[%c0_1, %c0_2] : memref<96x96xf32, #tpu.memory_space<vmem>>, vector<96x96xf32>
    %cst = arith.constant dense<0.000000e+00> : vector<16x96xf32>
    %2 = tpu.matmul %0, %1, %cst {dimension_numbers = #tpu.dot_dimension_numbers<[1], [0], [0], [1], [0, 0, 1, 1], [], []>} : vector<16x96xf32>, vector<96x96xf32>, vector<16x96xf32> -> vector<16x96xf32>
    %c0_3 = arith.constant 0 : index
    %c0_4 = arith.constant 0 : index
    %3 = vector.load %arg3[%c0_3, %c0_4] : memref<1x96xf32, #tpu.memory_space<vmem>>, vector<1x96xf32>
    %4 = vector.broadcast %3 : vector<1x96xf32> to vector<16x96xf32>
    %5 = arith.addf %2, %4 : vector<16x96xf32>
    %6 = vector.extract_strided_slice %5 {offsets = [0, 0], sizes = [16, 32], strides = [1, 1]} : vector<16x96xf32> to vector<16x32xf32>
    %7 = vector.extract_strided_slice %5 {offsets = [0, 32], sizes = [16, 32], strides = [1, 1]} : vector<16x96xf32> to vector<16x32xf32>
    %8 = vector.extract_strided_slice %5 {offsets = [0, 64], sizes = [16, 32], strides = [1, 1]} : vector<16x96xf32> to vector<16x32xf32>
    %9 = vector.extract_strided_slice %6 {offsets = [0, 0], sizes = [16, 8], strides = [1, 1]} : vector<16x32xf32> to vector<16x8xf32>
    %10 = vector.shape_cast %9 : vector<16x8xf32> to vector<2x8x8xf32>
    %11 = vector.extract_strided_slice %7 {offsets = [0, 0], sizes = [16, 8], strides = [1, 1]} : vector<16x32xf32> to vector<16x8xf32>
    %12 = vector.shape_cast %11 : vector<16x8xf32> to vector<2x8x8xf32>
    %13 = vector.extract_strided_slice %8 {offsets = [0, 0], sizes = [16, 8], strides = [1, 1]} : vector<16x32xf32> to vector<16x8xf32>
    %14 = vector.shape_cast %13 : vector<16x8xf32> to vector<2x8x8xf32>
    "tpu.trace_start"() <{level = 10 : i32, message = "bqd,bkd->bqk"}> : () -> ()
    %cst_5 = arith.constant dense<0.000000e+00> : vector<2x8x8xf32>
    %15 = tpu.matmul %10, %12, %cst_5 {dimension_numbers = #tpu.dot_dimension_numbers<[2], [2], [1], [1], [0, 0, 0, 1, 1, 1], [0], [0]>} : vector<2x8x8xf32>, vector<2x8x8xf32>, vector<2x8x8xf32> -> vector<2x8x8xf32>
    "tpu.trace_stop"() : () -> ()
    %cst_6 = arith.constant dense<0xFF800000> : vector<2x8xf32>
    %16 = vector.multi_reduction <maximumf>, %15, %cst_6 [2] : vector<2x8x8xf32> to vector<2x8xf32>
    %17 = vector.shape_cast %16 : vector<2x8xf32> to vector<2x8x1xf32>
    %18 = vector.broadcast %17 : vector<2x8x1xf32> to vector<2x8x8xf32>
    %19 = arith.subf %15, %18 : vector<2x8x8xf32>
    %20 = math.exp %19 : vector<2x8x8xf32>
    %cst_7 = arith.constant dense<0.000000e+00> : vector<2x8xf32>
    %21 = vector.multi_reduction <add>, %20, %cst_7 [2] : vector<2x8x8xf32> to vector<2x8xf32>
    %22 = vector.shape_cast %21 : vector<2x8xf32> to vector<2x8x1xf32>
    %23 = tpu.reciprocal %22 {approx = true} : vector<2x8x1xf32> -> vector<2x8x1xf32>
    %24 = vector.broadcast %23 : vector<2x8x1xf32> to vector<2x8x8xf32>
    %25 = arith.mulf %20, %24 : vector<2x8x8xf32>
    %26 = vector.shape_cast %25 : vector<2x8x8xf32> to vector<16x8xf32>
    "tpu.trace_start"() <{level = 10 : i32, message = "bqk,bkd->bqd"}> : () -> ()
    %cst_8 = arith.constant dense<0.000000e+00> : vector<2x8x8xf32>
    %27 = tpu.matmul %25, %14, %cst_8 {dimension_numbers = #tpu.dot_dimension_numbers<[2], [1], [1], [2], [0, 0, 0, 1, 1, 2], [0], [0]>} : vector<2x8x8xf32>, vector<2x8x8xf32>, vector<2x8x8xf32> -> vector<2x8x8xf32>
    "tpu.trace_stop"() : () -> ()
    %28 = vector.extract_strided_slice %6 {offsets = [0, 8], sizes = [16, 8], strides = [1, 1]} : vector<16x32xf32> to vector<16x8xf32>
    %29 = vector.shape_cast %28 : vector<16x8xf32> to vector<2x8x8xf32>
    %30 = vector.extract_strided_slice %7 {offsets = [0, 8], sizes = [16, 8], strides = [1, 1]} : vector<16x32xf32> to vector<16x8xf32>
    %31 = vector.shape_cast %30 : vector<16x8xf32> to vector<2x8x8xf32>
    %32 = vector.extract_strided_slice %8 {offsets = [0, 8], sizes = [16, 8], strides = [1, 1]} : vector<16x32xf32> to vector<16x8xf32>
    %33 = vector.shape_cast %32 : vector<16x8xf32> to vector<2x8x8xf32>
    "tpu.trace_start"() <{level = 10 : i32, message = "bqd,bkd->bqk"}> : () -> ()
    %cst_9 = arith.constant dense<0.000000e+00> : vector<2x8x8xf32>
    %34 = tpu.matmul %29, %31, %cst_9 {dimension_numbers = #tpu.dot_dimension_numbers<[2], [2], [1], [1], [0, 0, 0, 1, 1, 1], [0], [0]>} : vector<2x8x8xf32>, vector<2x8x8xf32>, vector<2x8x8xf32> -> vector<2x8x8xf32>
    "tpu.trace_stop"() : () -> ()
    %cst_10 = arith.constant dense<0xFF800000> : vector<2x8xf32>
    %35 = vector.multi_reduction <maximumf>, %34, %cst_10 [2] : vector<2x8x8xf32> to vector<2x8xf32>
    %36 = vector.shape_cast %35 : vector<2x8xf32> to vector<2x8x1xf32>
    %37 = vector.broadcast %36 : vector<2x8x1xf32> to vector<2x8x8xf32>
    %38 = arith.subf %34, %37 : vector<2x8x8xf32>
    %39 = math.exp %38 : vector<2x8x8xf32>
    %cst_11 = arith.constant dense<0.000000e+00> : vector<2x8xf32>
    %40 = vector.multi_reduction <add>, %39, %cst_11 [2] : vector<2x8x8xf32> to vector<2x8xf32>
    %41 = vector.shape_cast %40 : vector<2x8xf32> to vector<2x8x1xf32>
    %42 = tpu.reciprocal %41 {approx = true} : vector<2x8x1xf32> -> vector<2x8x1xf32>
    %43 = vector.broadcast %42 : vector<2x8x1xf32> to vector<2x8x8xf32>
    %44 = arith.mulf %39, %43 : vector<2x8x8xf32>
    %45 = vector.shape_cast %44 : vector<2x8x8xf32> to vector<16x8xf32>
    "tpu.trace_start"() <{level = 10 : i32, message = "bqk,bkd->bqd"}> : () -> ()
    %cst_12 = arith.constant dense<0.000000e+00> : vector<2x8x8xf32>
    %46 = tpu.matmul %44, %33, %cst_12 {dimension_numbers = #tpu.dot_dimension_numbers<[2], [1], [1], [2], [0, 0, 0, 1, 1, 2], [0], [0]>} : vector<2x8x8xf32>, vector<2x8x8xf32>, vector<2x8x8xf32> -> vector<2x8x8xf32>
    "tpu.trace_stop"() : () -> ()
    %47 = vector.extract_strided_slice %6 {offsets = [0, 16], sizes = [16, 8], strides = [1, 1]} : vector<16x32xf32> to vector<16x8xf32>
    %48 = vector.shape_cast %47 : vector<16x8xf32> to vector<2x8x8xf32>
    %49 = vector.extract_strided_slice %7 {offsets = [0, 16], sizes = [16, 8], strides = [1, 1]} : vector<16x32xf32> to vector<16x8xf32>
    %50 = vector.shape_cast %49 : vector<16x8xf32> to vector<2x8x8xf32>
    %51 = vector.extract_strided_slice %8 {offsets = [0, 16], sizes = [16, 8], strides = [1, 1]} : vector<16x32xf32> to vector<16x8xf32>
    %52 = vector.shape_cast %51 : vector<16x8xf32> to vector<2x8x8xf32>
    "tpu.trace_start"() <{level = 10 : i32, message = "bqd,bkd->bqk"}> : () -> ()
    %cst_13 = arith.constant dense<0.000000e+00> : vector<2x8x8xf32>
    %53 = tpu.matmul %48, %50, %cst_13 {dimension_numbers = #tpu.dot_dimension_numbers<[2], [2], [1], [1], [0, 0, 0, 1, 1, 1], [0], [0]>} : vector<2x8x8xf32>, vector<2x8x8xf32>, vector<2x8x8xf32> -> vector<2x8x8xf32>
    "tpu.trace_stop"() : () -> ()
    %cst_14 = arith.constant dense<0xFF800000> : vector<2x8xf32>
    %54 = vector.multi_reduction <maximumf>, %53, %cst_14 [2] : vector<2x8x8xf32> to vector<2x8xf32>
    %55 = vector.shape_cast %54 : vector<2x8xf32> to vector<2x8x1xf32>
    %56 = vector.broadcast %55 : vector<2x8x1xf32> to vector<2x8x8xf32>
    %57 = arith.subf %53, %56 : vector<2x8x8xf32>
    %58 = math.exp %57 : vector<2x8x8xf32>
    %cst_15 = arith.constant dense<0.000000e+00> : vector<2x8xf32>
    %59 = vector.multi_reduction <add>, %58, %cst_15 [2] : vector<2x8x8xf32> to vector<2x8xf32>
    %60 = vector.shape_cast %59 : vector<2x8xf32> to vector<2x8x1xf32>
    %61 = tpu.reciprocal %60 {approx = true} : vector<2x8x1xf32> -> vector<2x8x1xf32>
    %62 = vector.broadcast %61 : vector<2x8x1xf32> to vector<2x8x8xf32>
    %63 = arith.mulf %58, %62 : vector<2x8x8xf32>
    %64 = vector.shape_cast %63 : vector<2x8x8xf32> to vector<16x8xf32>
    "tpu.trace_start"() <{level = 10 : i32, message = "bqk,bkd->bqd"}> : () -> ()
    %cst_16 = arith.constant dense<0.000000e+00> : vector<2x8x8xf32>
    %65 = tpu.matmul %63, %52, %cst_16 {dimension_numbers = #tpu.dot_dimension_numbers<[2], [1], [1], [2], [0, 0, 0, 1, 1, 2], [0], [0]>} : vector<2x8x8xf32>, vector<2x8x8xf32>, vector<2x8x8xf32> -> vector<2x8x8xf32>
    "tpu.trace_stop"() : () -> ()
    %66 = vector.extract_strided_slice %6 {offsets = [0, 24], sizes = [16, 8], strides = [1, 1]} : vector<16x32xf32> to vector<16x8xf32>
    %67 = vector.shape_cast %66 : vector<16x8xf32> to vector<2x8x8xf32>
    %68 = vector.extract_strided_slice %7 {offsets = [0, 24], sizes = [16, 8], strides = [1, 1]} : vector<16x32xf32> to vector<16x8xf32>
    %69 = vector.shape_cast %68 : vector<16x8xf32> to vector<2x8x8xf32>
    %70 = vector.extract_strided_slice %8 {offsets = [0, 24], sizes = [16, 8], strides = [1, 1]} : vector<16x32xf32> to vector<16x8xf32>
    %71 = vector.shape_cast %70 : vector<16x8xf32> to vector<2x8x8xf32>
    "tpu.trace_start"() <{level = 10 : i32, message = "bqd,bkd->bqk"}> : () -> ()
    %cst_17 = arith.constant dense<0.000000e+00> : vector<2x8x8xf32>
    %72 = tpu.matmul %67, %69, %cst_17 {dimension_numbers = #tpu.dot_dimension_numbers<[2], [2], [1], [1], [0, 0, 0, 1, 1, 1], [0], [0]>} : vector<2x8x8xf32>, vector<2x8x8xf32>, vector<2x8x8xf32> -> vector<2x8x8xf32>
    "tpu.trace_stop"() : () -> ()
    %cst_18 = arith.constant dense<0xFF800000> : vector<2x8xf32>
    %73 = vector.multi_reduction <maximumf>, %72, %cst_18 [2] : vector<2x8x8xf32> to vector<2x8xf32>
    %74 = vector.shape_cast %73 : vector<2x8xf32> to vector<2x8x1xf32>
    %75 = vector.broadcast %74 : vector<2x8x1xf32> to vector<2x8x8xf32>
    %76 = arith.subf %72, %75 : vector<2x8x8xf32>
    %77 = math.exp %76 : vector<2x8x8xf32>
    %cst_19 = arith.constant dense<0.000000e+00> : vector<2x8xf32>
    %78 = vector.multi_reduction <add>, %77, %cst_19 [2] : vector<2x8x8xf32> to vector<2x8xf32>
    %79 = vector.shape_cast %78 : vector<2x8xf32> to vector<2x8x1xf32>
    %80 = tpu.reciprocal %79 {approx = true} : vector<2x8x1xf32> -> vector<2x8x1xf32>
    %81 = vector.broadcast %80 : vector<2x8x1xf32> to vector<2x8x8xf32>
    %82 = arith.mulf %77, %81 : vector<2x8x8xf32>
    %83 = vector.shape_cast %82 : vector<2x8x8xf32> to vector<16x8xf32>
    "tpu.trace_start"() <{level = 10 : i32, message = "bqk,bkd->bqd"}> : () -> ()
    %cst_20 = arith.constant dense<0.000000e+00> : vector<2x8x8xf32>
    %84 = tpu.matmul %82, %71, %cst_20 {dimension_numbers = #tpu.dot_dimension_numbers<[2], [1], [1], [2], [0, 0, 0, 1, 1, 2], [0], [0]>} : vector<2x8x8xf32>, vector<2x8x8xf32>, vector<2x8x8xf32> -> vector<2x8x8xf32>
    "tpu.trace_stop"() : () -> ()
    %85 = tpu.concatenate %26, %45, %64, %83 in 1 : vector<16x8xf32>, vector<16x8xf32>, vector<16x8xf32>, vector<16x8xf32> -> vector<16x32xf32>
    %c0_21 = arith.constant 0 : index
    %c0_22 = arith.constant 0 : index
    %86 = vector.load %arg7[%c0_21, %c0_22] : memref<16x32xf32, #tpu.memory_space<vmem>>, vector<16x32xf32>
    tpu.vector_store %arg7[%c0_21, %c0_22], %85 {strides = array<i32>} : memref<16x32xf32, #tpu.memory_space<vmem>>, vector<16x32xf32>,
    %87 = tpu.concatenate %27, %46, %65, %84 in 2 : vector<2x8x8xf32>, vector<2x8x8xf32>, vector<2x8x8xf32>, vector<2x8x8xf32> -> vector<2x8x32xf32>
    %88 = vector.shape_cast %87 : vector<2x8x32xf32> to vector<16x32xf32>
    %c0_23 = arith.constant 0 : index
    %c0_24 = arith.constant 0 : index
    %89 = vector.load %arg4[%c0_23, %c0_24] : memref<32x32xf32, #tpu.memory_space<vmem>>, vector<32x32xf32>
    %cst_25 = arith.constant dense<0.000000e+00> : vector<16x32xf32>
    %90 = tpu.matmul %88, %89, %cst_25 {dimension_numbers = #tpu.dot_dimension_numbers<[1], [0], [0], [1], [0, 0, 1, 1], [], []>} : vector<16x32xf32>, vector<32x32xf32>, vector<16x32xf32> -> vector<16x32xf32>
    %c0_26 = arith.constant 0 : index
    %c0_27 = arith.constant 0 : index
    %91 = vector.load %arg5[%c0_26, %c0_27] : memref<1x32xf32, #tpu.memory_space<vmem>>, vector<1x32xf32>
    %92 = vector.broadcast %91 : vector<1x32xf32> to vector<16x32xf32>
    %93 = arith.addf %90, %92 : vector<16x32xf32>
    %c0_28 = arith.constant 0 : index
    %c0_29 = arith.constant 0 : index
    %94 = vector.load %arg6[%c0_28, %c0_29] : memref<16x32xf32, #tpu.memory_space<vmem>>, vector<16x32xf32>
    tpu.vector_store %arg6[%c0_28, %c0_29], %93 {strides = array<i32>} : memref<16x32xf32, #tpu.memory_space<vmem>>, vector<16x32xf32>,
    return
  }
  func.func @transform_0(%arg0: i32) -> (i32, i32) {
    %c0_i32 = arith.constant 0 : i32
    %c0_i32_0 = arith.constant 0 : i32
    %c0_i32_1 = arith.constant 0 : i32
    return %c0_i32, %c0_i32_0 : i32, i32
  }
  func.func @transform_1(%arg0: i32) -> (i32, i32) {
    %c0_i32 = arith.constant 0 : i32
    %c0_i32_0 = arith.constant 0 : i32
    %c0_i32_1 = arith.constant 0 : i32
    return %c0_i32, %c0_i32_0 : i32, i32
  }
  func.func @transform_2(%arg0: i32) -> (i32, i32) {
    %c0_i32 = arith.constant 0 : i32
    %c0_i32_0 = arith.constant 0 : i32
    %c0_i32_1 = arith.constant 0 : i32
    return %c0_i32, %c0_i32_0 : i32, i32
  }
  func.func @transform_3(%arg0: i32) -> (i32, i32) {
    %c0_i32 = arith.constant 0 : i32
    %c0_i32_0 = arith.constant 0 : i32
    %c0_i32_1 = arith.constant 0 : i32
    return %c0_i32, %c0_i32_0 : i32, i32
  }
  func.func @transform_4(%arg0: i32) -> (i32, i32) {
    %c0_i32 = arith.constant 0 : i32
    %c0_i32_0 = arith.constant 0 : i32
    %c0_i32_1 = arith.constant 0 : i32
    return %c0_i32, %c0_i32_0 : i32, i32
  }
  func.func @transform_5(%arg0: i32) -> (i32, i32) {
    %c0_i32 = arith.constant 0 : i32
    %c0_i32_0 = arith.constant 0 : i32
    %c0_i32_1 = arith.constant 0 : i32
    return %c0_i32, %c0_i32_0 : i32, i32
  }
  func.func @transform_6(%arg0: i32) -> (i32, i32) {
    %c0_i32 = arith.constant 0 : i32
    %c0_i32_0 = arith.constant 0 : i32
    %c0_i32_1 = arith.constant 0 : i32
    return %c0_i32, %c0_i32_0 : i32, i32
  }
}

</mosaic_0001>

<llo_original>
// kernel: tpu_custom_call.1
$region0: #{tpu_custom_call.1}
  #allocation0 [shape = 'u32[]', space=smem, size = 0x4, offset = 0x4, fixed_abs, tag = 'smem constant byte address 0x4 - core index']
  #allocation1 [shape = 'u32[144,128]{1,0:T(1,128)}', space=vmem, size = 0x12000, scoped, tag = 'internal scratch']
  %s0 = inlined_call_operand.hbm [shape: f32[16,96], index: 0, kind: input, shape index: {}]
  %s1 = inlined_call_operand.hbm [shape: f32[96,96], index: 1, kind: input, shape index: {}]
  %s2 = inlined_call_operand.vmem [shape: f32[1,96], index: 2, kind: input, shape index: {}]
  %s3 = inlined_call_operand.hbm [shape: f32[32,32], index: 3, kind: input, shape index: {}]
  %s4 = inlined_call_operand.vmem [shape: f32[1,32], index: 4, kind: input, shape index: {}]
  %s5 = inlined_call_operand.hbm [shape: f32[16,32], index: 5, kind: output, shape index: {0}]
  %s6 = inlined_call_operand.hbm [shape: f32[16,32], index: 6, kind: output, shape index: {1}]
  %7 = xla_tuple %s5, %s6
  %s8 = sld [smem:[#allocation0]]
  $region50: #{tpu_custom_call.1} parent=0
    _
  %s10 = ssub.s32 1, %s8
  %s11 = scalar_select 0, %s10, %s8
  $region1: #{tpu_custom_call.1} parent=0
    #allocation2 [shape = 'u8[8192]{0}', space=vmem, size = 0x2000, scoped, tag = 'input window, operand 0, single buffered']
    #allocation3 [shape = 's32[1]{0}', space=sflag, size = 0x4, scoped, tag = 'scoped memory for tpu_custom_call.1']
    #allocation4 [shape = 's32[1]{0}', space=sflag, size = 0x4, scoped, tag = 'scoped memory for tpu_custom_call.1']
    #allocation5 [shape = 'u8[49152]{0}', space=vmem, size = 0xc000, scoped, tag = 'input window, operand 1, single buffered']
    #allocation6 [shape = 's32[1]{0}', space=sflag, size = 0x4, scoped, tag = 'scoped memory for tpu_custom_call.1']
    #allocation7 [shape = 'u8[16384]{0}', space=vmem, size = 0x4000, scoped, tag = 'input window, operand 3, single buffered']
    #allocation8 [shape = 'u8[8192]{0}', space=vmem, size = 0x2000, scoped, tag = 'output window, operand 0, single buffered']
    #allocation9 [shape = 'u8[8192]{0}', space=vmem, size = 0x2000, scoped, tag = 'output window, operand 1, single buffered']
    #allocation10 [shape = 's32[1]{0}', space=sflag, size = 0x4, scoped, tag = 'scoped memory for tpu_custom_call.1']
    %12 = vsyncpa [#allocation3], 0
    %13 = vsyncpa [#allocation6], 0
    %14 = vsyncpa [#allocation4], 0
    %15 = vsyncpa [#allocation10], 0
    // Predicated region
    $region2: #{tpu_custom_call.1} parent=1 // pred_check
      _
    $region3: #{tpu_custom_call.1} parent=1 // pred_check_branch
      %17 = sbr.rel (0) target = $region5
    $region4: #{tpu_custom_call.1} parent=1 // pred_region
      %s19 = ssub.s32 256, 256
      %20 = vsyncadd [#allocation3], %s19
      %s21 = sshll.u32 [#allocation2], 4
      %s22 = int_to_ptr.vmem [resolvable:$true] %s21
      %27 = dma.hbm_to_vmem [thread:$0]  %s0, 256, %s22, [#allocation3], 128, 128, 8
    $region5: #{tpu_custom_call.1} parent=1 // pred_fallthru
      _
    // Predicated region
    $region6: #{tpu_custom_call.1} parent=1 // pred_check
      _
    $region7: #{tpu_custom_call.1} parent=1 // pred_check_branch
      %29 = sbr.rel (0) target = $region9
    $region8: #{tpu_custom_call.1} parent=1 // pred_region
      %s31 = ssub.s32 1536, 1536
      %32 = vsyncadd [#allocation6], %s31
      %s33 = sshll.u32 [#allocation5], 4
      %s34 = int_to_ptr.vmem [resolvable:$true] %s33
      %39 = dma.hbm_to_vmem [thread:$0]  %s1, 1536, %s34, [#allocation6], 128, 128, 8
    $region9: #{tpu_custom_call.1} parent=1 // pred_fallthru
      _
    // Predicated region
    $region10: #{tpu_custom_call.1} parent=1 // pred_check
      _
    $region11: #{tpu_custom_call.1} parent=1 // pred_check_branch
      %41 = sbr.rel (0) target = $region13
    $region12: #{tpu_custom_call.1} parent=1 // pred_region
      _
    $region13: #{tpu_custom_call.1} parent=1 // pred_fallthru
      _
    // Predicated region
    $region14: #{tpu_custom_call.1} parent=1 // pred_check
      _
    $region15: #{tpu_custom_call.1} parent=1 // pred_check_branch
      %43 = sbr.rel (0) target = $region17
    $region16: #{tpu_custom_call.1} parent=1 // pred_region
      %s45 = ssub.s32 512, 512
      %46 = vsyncadd [#allocation6], %s45
      %s47 = sshll.u32 [#allocation7], 4
      %s48 = int_to_ptr.vmem [resolvable:$true] %s47
      %53 = dma.hbm_to_vmem [thread:$0]  %s3, 512, %s48, [#allocation6], 128, 128, 8
    $region17: #{tpu_custom_call.1} parent=1 // pred_fallthru
      _
    // Predicated region
    $region18: #{tpu_custom_call.1} parent=1 // pred_check
      _
    $region19: #{tpu_custom_call.1} parent=1 // pred_check_branch
      %55 = sbr.rel (0) target = $region21
    $region20: #{tpu_custom_call.1} parent=1 // pred_region
      _
    $region21: #{tpu_custom_call.1} parent=1 // pred_fallthru
      _
    // Predicated region
    $region22: #{tpu_custom_call.1} parent=1 // pred_check
      _
    $region23: #{tpu_custom_call.1} parent=1 // pred_check_branch
      %57 = sbr.rel (0) target = $region25
    $region24: #{tpu_custom_call.1} parent=1 // pred_region
      %58 = dma.done [#allocation3], 256
    $region25: #{tpu_custom_call.1} parent=1 // pred_fallthru
      _
    // Predicated region
    $region26: #{tpu_custom_call.1} parent=1 // pred_check
      _
    $region27: #{tpu_custom_call.1} parent=1 // pred_check_branch
      %60 = sbr.rel (0) target = $region29
    $region28: #{tpu_custom_call.1} parent=1 // pred_region
      %61 = dma.done [#allocation6], 1536
    $region29: #{tpu_custom_call.1} parent=1 // pred_fallthru
      _
    // Predicated region
    $region30: #{tpu_custom_call.1} parent=1 // pred_check
      _
    $region31: #{tpu_custom_call.1} parent=1 // pred_check_branch
      %63 = sbr.rel (0) target = $region33
    $region32: #{tpu_custom_call.1} parent=1 // pred_region
      %64 = dma.done [#allocation6], 512
    $region33: #{tpu_custom_call.1} parent=1 // pred_fallthru
      _
    %v65 = vld [vmem:[#allocation2] sm:$0xff]
    %v66 = vld [vmem:[#allocation2 + $0x8] sm:$0xff]
    %v67 = vld [vmem:[#allocation5] sm:$0xff]
    %v68 = vld [vmem:[#allocation5 + $0x8] sm:$0xff]
    %v69 = vld [vmem:[#allocation5 + $0x10] sm:$0xff]
    %v70 = vld [vmem:[#allocation5 + $0x18] sm:$0xff]
    %v71 = vld [vmem:[#allocation5 + $0x20] sm:$0xff]
    %v72 = vld [vmem:[#allocation5 + $0x28] sm:$0xff]
    %v73 = vld [vmem:[#allocation5 + $0x30] sm:$0xff]
    %v74 = vld [vmem:[#allocation5 + $0x38] sm:$0xff]
    %v75 = vld [vmem:[#allocation5 + $0x40] sm:$0xff]
    %v76 = vld [vmem:[#allocation5 + $0x48] sm:$0xff]
    %v77 = vld [vmem:[#allocation5 + $0x50] sm:$0xff]
    %v78 = vld [vmem:[#allocation5 + $0x58] sm:$0xff]
    %v79 = vld [vmem:[%s2] sm:$0x1]
    %v81 = vlaneseq
    %v82 = vshrl.u32 %v81, 7
    %v83 = vsub.s32 0, %v82
    %v84 = vrot.slane %v79, %v83
    %vm86 = vcmask 785408
    %v88 = vsel %vm86, %v65, 0
    %v91 = vsel %vm86, %v66, 0
    %93 = vmatprep.subr.mxu0 0.0
    %94 = vmatpush1.msra.mxu0 %v67
    %95 = vmatprep.subr.mxu0 0.0
    %96 = vmatpush1.msra.mxu0 %v68
    %97 = vmatprep.subr.mxu0 0.0
    %98 = vmatpush1.msra.mxu0 %v69
    %99 = vmatprep.subr.mxu0 0.0
    %100 = vmatpush1.msra.mxu0 %v70
    %101 = vmatprep.subr.mxu0 0.0
    %102 = vmatpush1.msra.mxu0 %v71
    %103 = vmatprep.subr.mxu0 0.0
    %104 = vmatpush1.msra.mxu0 %v72
    %105 = vmatprep.subr.mxu0 0.0
    %106 = vmatpush1.msra.mxu0 %v73
    %107 = vmatprep.subr.mxu0 0.0
    %108 = vmatpush1.msra.mxu0 %v74
    %109 = vmatprep.subr.mxu0 0.0
    %110 = vmatpush1.msra.mxu0 %v75
    %111 = vmatprep.subr.mxu0 0.0
    %112 = vmatpush1.msra.mxu0 %v76
    %113 = vmatprep.subr.mxu0 0.0
    %114 = vmatpush1.msra.mxu0 %v77
    %115 = vmatprep.subr.mxu0 0.0
    %116 = vmatpush1.msra.mxu0 %v78
    %117 = vmatprep.subr.mxu0 0.0
    %118 = vmatpush1.msra.mxu0 0.0
    %119 = vmatprep.subr.mxu0 0.0
    %120 = vmatpush1.msra.mxu0 0.0
    %121 = vmatprep.subr.mxu0 0.0
    %122 = vmatpush1.msra.mxu0 0.0
    %123 = vmatprep.subr.mxu0 0.0
    %124 = vmatpush1.msra.mxu0 0.0
    %125 = vmatprep.subr.mxu0 0.0
    %126 = vmatpush1.msra.mxu0 0.0
    %127 = vmatprep.subr.mxu0 0.0
    %128 = vmatpush1.msra.mxu0 0.0
    %129 = vmatprep.subr.mxu0 0.0
    %130 = vmatpush1.msra.mxu0 0.0
    %131 = vmatprep.subr.mxu0 0.0
    %132 = vmatpush1.msra.mxu0 0.0
    %133 = vmatprep.subr.mxu0 0.0
    %134 = vmatpush1.msra.mxu0 0.0
    %135 = vmatprep.subr.mxu0 0.0
    %136 = vmatpush1.msra.mxu0 0.0
    %137 = vmatprep.subr.mxu0 0.0
    %138 = vmatpush1.msra.mxu0 0.0
    %139 = vmatprep.subr.mxu0 0.0
    %140 = vmatpush1.msra.mxu0 0.0
    %141 = vmatprep.subr.mxu0 0.0
    %142 = vmatpush1.msra.mxu0 0.0
    %143 = vmatprep.subr.mxu0 0.0
    %144 = vmatpush1.msra.mxu0 0.0
    %145 = vmatprep.subr.mxu0 0.0
    %146 = vmatpush1.msra.mxu0 0.0
    %147 = vmatprep.subr.mxu0 0.0
    %148 = vmatpush1.msra.mxu0 0.0
    %149 = vmatprep.subr.mxu0 0.0
    %150 = vmatpush1.msra.mxu0 0.0
    %151 = vmatprep.subr.mxu0 0.0
    %152 = vmatpush1.msra.mxu0 0.0
    %153 = vmatprep.subr.mxu0 0.0
    %154 = vmatpush1.msra.mxu0 0.0
    %155 = vmatprep.subr.mxu0 0.0
    %156 = vmatpush1.msra.mxu0 0.0
    %157 = vmatprep.mubr.f32.mxu0 0.0
    %158 = vmatmul.mubr.f32.gmra.mrb[0].mxu0 %v88
    %v159 = vpop.f32.mrb[0].mxu0
    %v160 = vadd.f32 %v84, %v159
    %v161 = vpop.f32.mrb[0].mxu0
    %162 = vmatprep.mubr.f32.mxu0 0.0
    %163 = vmatmul.mubr.f32.gmra.mrb[0].mxu0 %v91
    %v164 = vpop.f32.mrb[0].mxu0
    %v165 = vadd.f32 %v84, %v164
    %v166 = vpop.f32.mrb[0].mxu0
    %167 = vdwg.mxu0
    %169 = vrot.lane.b32.xlu0 %v160, 96
    %v170 = vpop.permute.xlu0 %169
    %vm171 = vcmask 64512
    %v172 = vsel %vm171, %v160, 0
    %v174 = vsel %vm171, %v170, 0
    %176 = vmatprep.subr.mxu0 0.0
    %177 = vmatpush1.xpose.msra.mxu0 %v174
    %178 = vmatprep.subr.mxu0 0.0
    %179 = vmatpush1.xpose.msra.mxu0 0.0
    %180 = vmatprep.subr.mxu0 0.0
    %181 = vmatpush1.xpose.msra.mxu0 0.0
    %182 = vmatprep.subr.mxu0 0.0
    %183 = vmatpush1.xpose.msra.mxu0 0.0
    %184 = vmatprep.subr.mxu0 0.0
    %185 = vmatpush1.xpose.msra.mxu0 0.0
    %186 = vmatprep.subr.mxu0 0.0
    %187 = vmatpush1.xpose.msra.mxu0 0.0
    %188 = vmatprep.subr.mxu0 0.0
    %189 = vmatpush1.xpose.msra.mxu0 0.0
    %190 = vmatprep.subr.mxu0 0.0
    %191 = vmatpush1.xpose.msra.mxu0 0.0
    %192 = vmatprep.subr.mxu0 0.0
    %193 = vmatpush1.xpose.msra.mxu0 0.0
    %194 = vmatprep.subr.mxu0 0.0
    %195 = vmatpush1.xpose.msra.mxu0 0.0
    %196 = vmatprep.subr.mxu0 0.0
    %197 = vmatpush1.xpose.msra.mxu0 0.0
    %198 = vmatprep.subr.mxu0 0.0
    %199 = vmatpush1.xpose.msra.mxu0 0.0
    %200 = vmatprep.subr.mxu0 0.0
    %201 = vmatpush1.xpose.msra.mxu0 0.0
    %202 = vmatprep.subr.mxu0 0.0
    %203 = vmatpush1.xpose.msra.mxu0 0.0
    %204 = vmatprep.subr.mxu0 0.0
    %205 = vmatpush1.xpose.msra.mxu0 0.0
    %206 = vmatprep.subr.mxu0 0.0
    %207 = vmatpush1.xpose.msra.mxu0 0.0
    %208 = vmatprep.subr.mxu0 0.0
    %209 = vmatpush1.xpose.msra.mxu0 0.0
    %210 = vmatprep.subr.mxu0 0.0
    %211 = vmatpush1.xpose.msra.mxu0 0.0
    %212 = vmatprep.subr.mxu0 0.0
    %213 = vmatpush1.xpose.msra.mxu0 0.0
    %214 = vmatprep.subr.mxu0 0.0
    %215 = vmatpush1.xpose.msra.mxu0 0.0
    %216 = vmatprep.subr.mxu0 0.0
    %217 = vmatpush1.xpose.msra.mxu0 0.0
    %218 = vmatprep.subr.mxu0 0.0
    %219 = vmatpush1.xpose.msra.mxu0 0.0
    %220 = vmatprep.subr.mxu0 0.0
    %221 = vmatpush1.xpose.msra.mxu0 0.0
    %222 = vmatprep.subr.mxu0 0.0
    %223 = vmatpush1.xpose.msra.mxu0 0.0
    %224 = vmatprep.subr.mxu0 0.0
    %225 = vmatpush1.xpose.msra.mxu0 0.0
    %226 = vmatprep.subr.mxu0 0.0
    %227 = vmatpush1.xpose.msra.mxu0 0.0
    %228 = vmatprep.subr.mxu0 0.0
    %229 = vmatpush1.xpose.msra.mxu0 0.0
    %230 = vmatprep.subr.mxu0 0.0
    %231 = vmatpush1.xpose.msra.mxu0 0.0
    %232 = vmatprep.subr.mxu0 0.0
    %233 = vmatpush1.xpose.msra.mxu0 0.0
    %234 = vmatprep.subr.mxu0 0.0
    %235 = vmatpush1.xpose.msra.mxu0 0.0
    %236 = vmatprep.subr.mxu0 0.0
    %237 = vmatpush1.xpose.msra.mxu0 0.0
    %238 = vmatprep.subr.mxu0 0.0
    %239 = vmatpush1.xpose.msra.mxu0 0.0
    %240 = vmatprep.mubr.f32.mxu0 0.0
    %241 = vmatmul.mubr.f32.gmra.mrb[0].mxu0 %v172
    %v242 = vpop.f32.mrb[0].mxu0
    %v243 = vadd.f32 0.0, %v242
    %v244 = vpop.f32.mrb[0].mxu0
    %245 = vdwg.mxu0
    %247 = vrot.lane.b32.xlu0 %v165, 96
    %v248 = vpop.permute.xlu0 %247
    %v249 = vsel %vm171, %v165, 0
    %v251 = vsel %vm171, %v248, 0
    %253 = vmatprep.subr.mxu0 0.0
    %254 = vmatpush1.xpose.msra.mxu0 %v251
    %255 = vmatprep.subr.mxu0 0.0
    %256 = vmatpush1.xpose.msra.mxu0 0.0
    %257 = vmatprep.subr.mxu0 0.0
    %258 = vmatpush1.xpose.msra.mxu0 0.0
    %259 = vmatprep.subr.mxu0 0.0
    %260 = vmatpush1.xpose.msra.mxu0 0.0
    %261 = vmatprep.subr.mxu0 0.0
    %262 = vmatpush1.xpose.msra.mxu0 0.0
    %263 = vmatprep.subr.mxu0 0.0
    %264 = vmatpush1.xpose.msra.mxu0 0.0
    %265 = vmatprep.subr.mxu0 0.0
    %266 = vmatpush1.xpose.msra.mxu0 0.0
    %267 = vmatprep.subr.mxu0 0.0
    %268 = vmatpush1.xpose.msra.mxu0 0.0
    %269 = vmatprep.subr.mxu0 0.0
    %270 = vmatpush1.xpose.msra.mxu0 0.0
    %271 = vmatprep.subr.mxu0 0.0
    %272 = vmatpush1.xpose.msra.mxu0 0.0
    %273 = vmatprep.subr.mxu0 0.0
    %274 = vmatpush1.xpose.msra.mxu0 0.0
    %275 = vmatprep.subr.mxu0 0.0
    %276 = vmatpush1.xpose.msra.mxu0 0.0
    %277 = vmatprep.subr.mxu0 0.0
    %278 = vmatpush1.xpose.msra.mxu0 0.0
    %279 = vmatprep.subr.mxu0 0.0
    %280 = vmatpush1.xpose.msra.mxu0 0.0
    %281 = vmatprep.subr.mxu0 0.0
    %282 = vmatpush1.xpose.msra.mxu0 0.0
    %283 = vmatprep.subr.mxu0 0.0
    %284 = vmatpush1.xpose.msra.mxu0 0.0
    %285 = vmatprep.subr.mxu0 0.0
    %286 = vmatpush1.xpose.msra.mxu0 0.0
    %287 = vmatprep.subr.mxu0 0.0
    %288 = vmatpush1.xpose.msra.mxu0 0.0
    %289 = vmatprep.subr.mxu0 0.0
    %290 = vmatpush1.xpose.msra.mxu0 0.0
    %291 = vmatprep.subr.mxu0 0.0
    %292 = vmatpush1.xpose.msra.mxu0 0.0
    %293 = vmatprep.subr.mxu0 0.0
    %294 = vmatpush1.xpose.msra.mxu0 0.0
    %295 = vmatprep.subr.mxu0 0.0
    %296 = vmatpush1.xpose.msra.mxu0 0.0
    %297 = vmatprep.subr.mxu0 0.0
    %298 = vmatpush1.xpose.msra.mxu0 0.0
    %299 = vmatprep.subr.mxu0 0.0
    %300 = vmatpush1.xpose.msra.mxu0 0.0
    %301 = vmatprep.subr.mxu0 0.0
    %302 = vmatpush1.xpose.msra.mxu0 0.0
    %303 = vmatprep.subr.mxu0 0.0
    %304 = vmatpush1.xpose.msra.mxu0 0.0
    %305 = vmatprep.subr.mxu0 0.0
    %306 = vmatpush1.xpose.msra.mxu0 0.0
    %307 = vmatprep.subr.mxu0 0.0
    %308 = vmatpush1.xpose.msra.mxu0 0.0
    %309 = vmatprep.subr.mxu0 0.0
    %310 = vmatpush1.xpose.msra.mxu0 0.0
    %311 = vmatprep.subr.mxu0 0.0
    %312 = vmatpush1.xpose.msra.mxu0 0.0
    %313 = vmatprep.subr.mxu0 0.0
    %314 = vmatpush1.xpose.msra.mxu0 0.0
    %315 = vmatprep.subr.mxu0 0.0
    %316 = vmatpush1.xpose.msra.mxu0 0.0
    %317 = vmatprep.mubr.f32.mxu0 0.0
    %318 = vmatmul.mubr.f32.gmra.mrb[0].mxu0 %v249
    %v319 = vpop.f32.mrb[0].mxu0
    %v320 = vadd.f32 0.0, %v319
    %v321 = vpop.f32.mrb[0].mxu0
    %322 = vdwg.mxu0
    %v323 = vsel %vm171, %v243, -inf
    %324 = vmax.xlane.f32.xlu0 %v323
    %v325 = vpop.xlane.xlu0 %324
    %v326 = vsel %vm171, %v320, -inf
    %327 = vmax.xlane.f32.xlu0 %v326
    %v328 = vpop.xlane.xlu0 %327
    %v329 = vsub.f32 %v243, %v325
    %v330 = vsub.f32 %v320, %v328
    %v331 = vmul.f32 %v329, 1.442695
    %v332 = vpow.pop %v331
    %v333 = vmul.f32 %v330, 1.442695
    %v334 = vpow.pop %v333
    %v335 = vsel %vm171, %v332, 0.0
    %336 = vadd.xlane.f32.xlu0 %v335
    %v337 = vpop.xlane.xlu0 %336
    %v338 = vsel %vm171, %v334, 0.0
    %339 = vadd.xlane.f32.xlu0 %v338
    %v340 = vpop.xlane.xlu0 %339
    %v341 = vrcp.pop %v337
    %v342 = vrcp.pop %v340
    %v343 = vmul.f32 %v332, %v341
    %v344 = vmul.f32 %v334, %v342
    %345 = vrot.lane.b32.xlu0 %v160, 64
    %v346 = vpop.permute.xlu0 %345
    %v349 = vsel %vm171, %v343, 0
    %351 = vmatprep.subr.mxu0 0.0
    %352 = vmatpush1.msra.mxu0 %v346
    %353 = vmatprep.subr.mxu0 0.0
    %354 = vmatpush1.msra.mxu0 0.0
    %355 = vmatprep.subr.mxu0 0.0
    %356 = vmatpush1.msra.mxu0 0.0
    %357 = vmatprep.subr.mxu0 0.0
    %358 = vmatpush1.msra.mxu0 0.0
    %359 = vmatprep.subr.mxu0 0.0
    %360 = vmatpush1.msra.mxu0 0.0
    %361 = vmatprep.subr.mxu0 0.0
    %362 = vmatpush1.msra.mxu0 0.0
    %363 = vmatprep.subr.mxu0 0.0
    %364 = vmatpush1.msra.mxu0 0.0
    %365 = vmatprep.subr.mxu0 0.0
    %366 = vmatpush1.msra.mxu0 0.0
    %367 = vmatprep.subr.mxu0 0.0
    %368 = vmatpush1.msra.mxu0 0.0
    %369 = vmatprep.subr.mxu0 0.0
    %370 = vmatpush1.msra.mxu0 0.0
    %371 = vmatprep.subr.mxu0 0.0
    %372 = vmatpush1.msra.mxu0 0.0
    %373 = vmatprep.subr.mxu0 0.0
    %374 = vmatpush1.msra.mxu0 0.0
    %375 = vmatprep.subr.mxu0 0.0
    %376 = vmatpush1.msra.mxu0 0.0
    %377 = vmatprep.subr.mxu0 0.0
    %378 = vmatpush1.msra.mxu0 0.0
    %379 = vmatprep.subr.mxu0 0.0
    %380 = vmatpush1.msra.mxu0 0.0
    %381 = vmatprep.subr.mxu0 0.0
    %382 = vmatpush1.msra.mxu0 0.0
    %383 = vmatprep.subr.mxu0 0.0
    %384 = vmatpush1.msra.mxu0 0.0
    %385 = vmatprep.subr.mxu0 0.0
    %386 = vmatpush1.msra.mxu0 0.0
    %387 = vmatprep.subr.mxu0 0.0
    %388 = vmatpush1.msra.mxu0 0.0
    %389 = vmatprep.subr.mxu0 0.0
    %390 = vmatpush1.msra.mxu0 0.0
    %391 = vmatprep.subr.mxu0 0.0
    %392 = vmatpush1.msra.mxu0 0.0
    %393 = vmatprep.subr.mxu0 0.0
    %394 = vmatpush1.msra.mxu0 0.0
    %395 = vmatprep.subr.mxu0 0.0
    %396 = vmatpush1.msra.mxu0 0.0
    %397 = vmatprep.subr.mxu0 0.0
    %398 = vmatpush1.msra.mxu0 0.0
    %399 = vmatprep.subr.mxu0 0.0
    %400 = vmatpush1.msra.mxu0 0.0
    %401 = vmatprep.subr.mxu0 0.0
    %402 = vmatpush1.msra.mxu0 0.0
    %403 = vmatprep.subr.mxu0 0.0
    %404 = vmatpush1.msra.mxu0 0.0
    %405 = vmatprep.subr.mxu0 0.0
    %406 = vmatpush1.msra.mxu0 0.0
    %407 = vmatprep.subr.mxu0 0.0
    %408 = vmatpush1.msra.mxu0 0.0
    %409 = vmatprep.subr.mxu0 0.0
    %410 = vmatpush1.msra.mxu0 0.0
    %411 = vmatprep.subr.mxu0 0.0
    %412 = vmatpush1.msra.mxu0 0.0
    %413 = vmatprep.subr.mxu0 0.0
    %414 = vmatpush1.msra.mxu0 0.0
    %415 = vmatprep.mubr.f32.mxu0 0.0
    %416 = vmatmul.mubr.f32.gmra.mrb[0].mxu0 %v349
    %v417 = vpop.f32.mrb[0].mxu0
    %v418 = vadd.f32 0.0, %v417
    %v419 = vpop.f32.mrb[0].mxu0
    %420 = vdwg.mxu0
    %421 = vrot.lane.b32.xlu0 %v165, 64
    %v422 = vpop.permute.xlu0 %421
    %v425 = vsel %vm171, %v344, 0
    %427 = vmatprep.subr.mxu0 0.0
    %428 = vmatpush1.msra.mxu0 %v422
    %429 = vmatprep.subr.mxu0 0.0
    %430 = vmatpush1.msra.mxu0 0.0
    %431 = vmatprep.subr.mxu0 0.0
    %432 = vmatpush1.msra.mxu0 0.0
    %433 = vmatprep.subr.mxu0 0.0
    %434 = vmatpush1.msra.mxu0 0.0
    %435 = vmatprep.subr.mxu0 0.0
    %436 = vmatpush1.msra.mxu0 0.0
    %437 = vmatprep.subr.mxu0 0.0
    %438 = vmatpush1.msra.mxu0 0.0
    %439 = vmatprep.subr.mxu0 0.0
    %440 = vmatpush1.msra.mxu0 0.0
    %441 = vmatprep.subr.mxu0 0.0
    %442 = vmatpush1.msra.mxu0 0.0
    %443 = vmatprep.subr.mxu0 0.0
    %444 = vmatpush1.msra.mxu0 0.0
    %445 = vmatprep.subr.mxu0 0.0
    %446 = vmatpush1.msra.mxu0 0.0
    %447 = vmatprep.subr.mxu0 0.0
    %448 = vmatpush1.msra.mxu0 0.0
    %449 = vmatprep.subr.mxu0 0.0
    %450 = vmatpush1.msra.mxu0 0.0
    %451 = vmatprep.subr.mxu0 0.0
    %452 = vmatpush1.msra.mxu0 0.0
    %453 = vmatprep.subr.mxu0 0.0
    %454 = vmatpush1.msra.mxu0 0.0
    %455 = vmatprep.subr.mxu0 0.0
    %456 = vmatpush1.msra.mxu0 0.0
    %457 = vmatprep.subr.mxu0 0.0
    %458 = vmatpush1.msra.mxu0 0.0
    %459 = vmatprep.subr.mxu0 0.0
    %460 = vmatpush1.msra.mxu0 0.0
    %461 = vmatprep.subr.mxu0 0.0
    %462 = vmatpush1.msra.mxu0 0.0
    %463 = vmatprep.subr.mxu0 0.0
    %464 = vmatpush1.msra.mxu0 0.0
    %465 = vmatprep.subr.mxu0 0.0
    %466 = vmatpush1.msra.mxu0 0.0
    %467 = vmatprep.subr.mxu0 0.0
    %468 = vmatpush1.msra.mxu0 0.0
    %469 = vmatprep.subr.mxu0 0.0
    %470 = vmatpush1.msra.mxu0 0.0
    %471 = vmatprep.subr.mxu0 0.0
    %472 = vmatpush1.msra.mxu0 0.0
    %473 = vmatprep.subr.mxu0 0.0
    %474 = vmatpush1.msra.mxu0 0.0
    %475 = vmatprep.subr.mxu0 0.0
    %476 = vmatpush1.msra.mxu0 0.0
    %477 = vmatprep.subr.mxu0 0.0
    %478 = vmatpush1.msra.mxu0 0.0
    %479 = vmatprep.subr.mxu0 0.0
    %480 = vmatpush1.msra.mxu0 0.0
    %481 = vmatprep.subr.mxu0 0.0
    %482 = vmatpush1.msra.mxu0 0.0
    %483 = vmatprep.subr.mxu0 0.0
    %484 = vmatpush1.msra.mxu0 0.0
    %485 = vmatprep.subr.mxu0 0.0
    %486 = vmatpush1.msra.mxu0 0.0
    %487 = vmatprep.subr.mxu0 0.0
    %488 = vmatpush1.msra.mxu0 0.0
    %489 = vmatprep.subr.mxu0 0.0
    %490 = vmatpush1.msra.mxu0 0.0
    %491 = vmatprep.mubr.f32.mxu0 0.0
    %492 = vmatmul.mubr.f32.gmra.mrb[0].mxu0 %v425
    %v493 = vpop.f32.mrb[0].mxu0
    %v494 = vadd.f32 0.0, %v493
    %v495 = vpop.f32.mrb[0].mxu0
    %496 = vdwg.mxu0
    %497 = vrot.lane.b32.xlu0 %v160, 120
    %v498 = vpop.permute.xlu0 %497
    %499 = vrot.lane.b32.xlu0 %v160, 88
    %v500 = vpop.permute.xlu0 %499
    %v501 = vsel %vm171, %v498, 0
    %v503 = vsel %vm171, %v500, 0
    %505 = vmatprep.subr.mxu0 0.0
    %506 = vmatpush1.xpose.msra.mxu0 %v503
    %507 = vmatprep.subr.mxu0 0.0
    %508 = vmatpush1.xpose.msra.mxu0 0.0
    %509 = vmatprep.subr.mxu0 0.0
    %510 = vmatpush1.xpose.msra.mxu0 0.0
    %511 = vmatprep.subr.mxu0 0.0
    %512 = vmatpush1.xpose.msra.mxu0 0.0
    %513 = vmatprep.subr.mxu0 0.0
    %514 = vmatpush1.xpose.msra.mxu0 0.0
    %515 = vmatprep.subr.mxu0 0.0
    %516 = vmatpush1.xpose.msra.mxu0 0.0
    %517 = vmatprep.subr.mxu0 0.0
    %518 = vmatpush1.xpose.msra.mxu0 0.0
    %519 = vmatprep.subr.mxu0 0.0
    %520 = vmatpush1.xpose.msra.mxu0 0.0
    %521 = vmatprep.subr.mxu0 0.0
    %522 = vmatpush1.xpose.msra.mxu0 0.0
    %523 = vmatprep.subr.mxu0 0.0
    %524 = vmatpush1.xpose.msra.mxu0 0.0
    %525 = vmatprep.subr.mxu0 0.0
    %526 = vmatpush1.xpose.msra.mxu0 0.0
    %527 = vmatprep.subr.mxu0 0.0
    %528 = vmatpush1.xpose.msra.mxu0 0.0
    %529 = vmatprep.subr.mxu0 0.0
    %530 = vmatpush1.xpose.msra.mxu0 0.0
    %531 = vmatprep.subr.mxu0 0.0
    %532 = vmatpush1.xpose.msra.mxu0 0.0
    %533 = vmatprep.subr.mxu0 0.0
    %534 = vmatpush1.xpose.msra.mxu0 0.0
    %535 = vmatprep.subr.mxu0 0.0
    %536 = vmatpush1.xpose.msra.mxu0 0.0
    %537 = vmatprep.subr.mxu0 0.0
    %538 = vmatpush1.xpose.msra.mxu0 0.0
    %539 = vmatprep.subr.mxu0 0.0
    %540 = vmatpush1.xpose.msra.mxu0 0.0
    %541 = vmatprep.subr.mxu0 0.0
    %542 = vmatpush1.xpose.msra.mxu0 0.0
    %543 = vmatprep.subr.mxu0 0.0
    %544 = vmatpush1.xpose.msra.mxu0 0.0
    %545 = vmatprep.subr.mxu0 0.0
    %546 = vmatpush1.xpose.msra.mxu0 0.0
    %547 = vmatprep.subr.mxu0 0.0
    %548 = vmatpush1.xpose.msra.mxu0 0.0
    %549 = vmatprep.subr.mxu0 0.0
    %550 = vmatpush1.xpose.msra.mxu0 0.0
    %551 = vmatprep.subr.mxu0 0.0
    %552 = vmatpush1.xpose.msra.mxu0 0.0
    %553 = vmatprep.subr.mxu0 0.0
    %554 = vmatpush1.xpose.msra.mxu0 0.0
    %555 = vmatprep.subr.mxu0 0.0
    %556 = vmatpush1.xpose.msra.mxu0 0.0
    %557 = vmatprep.subr.mxu0 0.0
    %558 = vmatpush1.xpose.msra.mxu0 0.0
    %559 = vmatprep.subr.mxu0 0.0
    %560 = vmatpush1.xpose.msra.mxu0 0.0
    %561 = vmatprep.subr.mxu0 0.0
    %562 = vmatpush1.xpose.msra.mxu0 0.0
    %563 = vmatprep.subr.mxu0 0.0
    %564 = vmatpush1.xpose.msra.mxu0 0.0
    %565 = vmatprep.subr.mxu0 0.0
    %566 = vmatpush1.xpose.msra.mxu0 0.0
    %567 = vmatprep.subr.mxu0 0.0
    %568 = vmatpush1.xpose.msra.mxu0 0.0
    %569 = vmatprep.mubr.f32.mxu0 0.0
    %570 = vmatmul.mubr.f32.gmra.mrb[0].mxu0 %v501
    %v571 = vpop.f32.mrb[0].mxu0
    %v572 = vadd.f32 0.0, %v571
    %v573 = vpop.f32.mrb[0].mxu0
    %574 = vdwg.mxu0
    %575 = vrot.lane.b32.xlu0 %v165, 120
    %v576 = vpop.permute.xlu0 %575
    %577 = vrot.lane.b32.xlu0 %v165, 88
    %v578 = vpop.permute.xlu0 %577
    %v579 = vsel %vm171, %v576, 0
    %v581 = vsel %vm171, %v578, 0
    %583 = vmatprep.subr.mxu0 0.0
    %584 = vmatpush1.xpose.msra.mxu0 %v581
    %585 = vmatprep.subr.mxu0 0.0
    %586 = vmatpush1.xpose.msra.mxu0 0.0
    %587 = vmatprep.subr.mxu0 0.0
    %588 = vmatpush1.xpose.msra.mxu0 0.0
    %589 = vmatprep.subr.mxu0 0.0
    %590 = vmatpush1.xpose.msra.mxu0 0.0
    %591 = vmatprep.subr.mxu0 0.0
    %592 = vmatpush1.xpose.msra.mxu0 0.0
    %593 = vmatprep.subr.mxu0 0.0
    %594 = vmatpush1.xpose.msra.mxu0 0.0
    %595 = vmatprep.subr.mxu0 0.0
    %596 = vmatpush1.xpose.msra.mxu0 0.0
    %597 = vmatprep.subr.mxu0 0.0
    %598 = vmatpush1.xpose.msra.mxu0 0.0
    %599 = vmatprep.subr.mxu0 0.0
    %600 = vmatpush1.xpose.msra.mxu0 0.0
    %601 = vmatprep.subr.mxu0 0.0
    %602 = vmatpush1.xpose.msra.mxu0 0.0
    %603 = vmatprep.subr.mxu0 0.0
    %604 = vmatpush1.xpose.msra.mxu0 0.0
    %605 = vmatprep.subr.mxu0 0.0
    %606 = vmatpush1.xpose.msra.mxu0 0.0
    %607 = vmatprep.subr.mxu0 0.0
    %608 = vmatpush1.xpose.msra.mxu0 0.0
    %609 = vmatprep.subr.mxu0 0.0
    %610 = vmatpush1.xpose.msra.mxu0 0.0
    %611 = vmatprep.subr.mxu0 0.0
    %612 = vmatpush1.xpose.msra.mxu0 0.0
    %613 = vmatprep.subr.mxu0 0.0
    %614 = vmatpush1.xpose.msra.mxu0 0.0
    %615 = vmatprep.subr.mxu0 0.0
    %616 = vmatpush1.xpose.msra.mxu0 0.0
    %617 = vmatprep.subr.mxu0 0.0
    %618 = vmatpush1.xpose.msra.mxu0 0.0
    %619 = vmatprep.subr.mxu0 0.0
    %620 = vmatpush1.xpose.msra.mxu0 0.0
    %621 = vmatprep.subr.mxu0 0.0
    %622 = vmatpush1.xpose.msra.mxu0 0.0
    %623 = vmatprep.subr.mxu0 0.0
    %624 = vmatpush1.xpose.msra.mxu0 0.0
    %625 = vmatprep.subr.mxu0 0.0
    %626 = vmatpush1.xpose.msra.mxu0 0.0
    %627 = vmatprep.subr.mxu0 0.0
    %628 = vmatpush1.xpose.msra.mxu0 0.0
    %629 = vmatprep.subr.mxu0 0.0
    %630 = vmatpush1.xpose.msra.mxu0 0.0
    %631 = vmatprep.subr.mxu0 0.0
    %632 = vmatpush1.xpose.msra.mxu0 0.0
    %633 = vmatprep.subr.mxu0 0.0
    %634 = vmatpush1.xpose.msra.mxu0 0.0
    %635 = vmatprep.subr.mxu0 0.0
    %636 = vmatpush1.xpose.msra.mxu0 0.0
    %637 = vmatprep.subr.mxu0 0.0
    %638 = vmatpush1.xpose.msra.mxu0 0.0
    %639 = vmatprep.subr.mxu0 0.0
    %640 = vmatpush1.xpose.msra.mxu0 0.0
    %641 = vmatprep.subr.mxu0 0.0
    %642 = vmatpush1.xpose.msra.mxu0 0.0
    %643 = vmatprep.subr.mxu0 0.0
    %644 = vmatpush1.xpose.msra.mxu0 0.0
    %645 = vmatprep.subr.mxu0 0.0
    %646 = vmatpush1.xpose.msra.mxu0 0.0
    %647 = vmatprep.mubr.f32.mxu0 0.0
    %648 = vmatmul.mubr.f32.gmra.mrb[0].mxu0 %v579
    %v649 = vpop.f32.mrb[0].mxu0
    %v650 = vadd.f32 0.0, %v649
    %v651 = vpop.f32.mrb[0].mxu0
    %652 = vdwg.mxu0
    %v653 = vsel %vm171, %v572, -inf
    %654 = vmax.xlane.f32.xlu0 %v653
    %v655 = vpop.xlane.xlu0 %654
    %v656 = vsel %vm171, %v650, -inf
    %657 = vmax.xlane.f32.xlu0 %v656
    %v658 = vpop.xlane.xlu0 %657
    %v659 = vsub.f32 %v572, %v655
    %v660 = vsub.f32 %v650, %v658
    %v661 = vmul.f32 %v659, 1.442695
    %v662 = vpow.pop %v661
    %v663 = vmul.f32 %v660, 1.442695
    %v664 = vpow.pop %v663
    %v665 = vsel %vm171, %v662, 0.0
    %666 = vadd.xlane.f32.xlu0 %v665
    %v667 = vpop.xlane.xlu0 %666
    %v668 = vsel %vm171, %v664, 0.0
    %669 = vadd.xlane.f32.xlu0 %v668
    %v670 = vpop.xlane.xlu0 %669
    %v671 = vrcp.pop %v667
    %v672 = vrcp.pop %v670
    %v673 = vmul.f32 %v662, %v671
    %v674 = vmul.f32 %v664, %v672
    %675 = vrot.lane.b32.xlu0 %v160, 56
    %v676 = vpop.permute.xlu0 %675
    %v679 = vsel %vm171, %v673, 0
    %681 = vmatprep.subr.mxu0 0.0
    %682 = vmatpush1.msra.mxu0 %v676
    %683 = vmatprep.subr.mxu0 0.0
    %684 = vmatpush1.msra.mxu0 0.0
    %685 = vmatprep.subr.mxu0 0.0
    %686 = vmatpush1.msra.mxu0 0.0
    %687 = vmatprep.subr.mxu0 0.0
    %688 = vmatpush1.msra.mxu0 0.0
    %689 = vmatprep.subr.mxu0 0.0
    %690 = vmatpush1.msra.mxu0 0.0
    %691 = vmatprep.subr.mxu0 0.0
    %692 = vmatpush1.msra.mxu0 0.0
    %693 = vmatprep.subr.mxu0 0.0
    %694 = vmatpush1.msra.mxu0 0.0
    %695 = vmatprep.subr.mxu0 0.0
    %696 = vmatpush1.msra.mxu0 0.0
    %697 = vmatprep.subr.mxu0 0.0
    %698 = vmatpush1.msra.mxu0 0.0
    %699 = vmatprep.subr.mxu0 0.0
    %700 = vmatpush1.msra.mxu0 0.0
    %701 = vmatprep.subr.mxu0 0.0
    %702 = vmatpush1.msra.mxu0 0.0
    %703 = vmatprep.subr.mxu0 0.0
    %704 = vmatpush1.msra.mxu0 0.0
    %705 = vmatprep.subr.mxu0 0.0
    %706 = vmatpush1.msra.mxu0 0.0
    %707 = vmatprep.subr.mxu0 0.0
    %708 = vmatpush1.msra.mxu0 0.0
    %709 = vmatprep.subr.mxu0 0.0
    %710 = vmatpush1.msra.mxu0 0.0
    %711 = vmatprep.subr.mxu0 0.0
    %712 = vmatpush1.msra.mxu0 0.0
    %713 = vmatprep.subr.mxu0 0.0
    %714 = vmatpush1.msra.mxu0 0.0
    %715 = vmatprep.subr.mxu0 0.0
    %716 = vmatpush1.msra.mxu0 0.0
    %717 = vmatprep.subr.mxu0 0.0
    %718 = vmatpush1.msra.mxu0 0.0
    %719 = vmatprep.subr.mxu0 0.0
    %720 = vmatpush1.msra.mxu0 0.0
    %721 = vmatprep.subr.mxu0 0.0
    %722 = vmatpush1.msra.mxu0 0.0
    %723 = vmatprep.subr.mxu0 0.0
    %724 = vmatpush1.msra.mxu0 0.0
    %725 = vmatprep.subr.mxu0 0.0
    %726 = vmatpush1.msra.mxu0 0.0
    %727 = vmatprep.subr.mxu0 0.0
    %728 = vmatpush1.msra.mxu0 0.0
    %729 = vmatprep.subr.mxu0 0.0
    %730 = vmatpush1.msra.mxu0 0.0
    %731 = vmatprep.subr.mxu0 0.0
    %732 = vmatpush1.msra.mxu0 0.0
    %733 = vmatprep.subr.mxu0 0.0
    %734 = vmatpush1.msra.mxu0 0.0
    %735 = vmatprep.subr.mxu0 0.0
    %736 = vmatpush1.msra.mxu0 0.0
    %737 = vmatprep.subr.mxu0 0.0
    %738 = vmatpush1.msra.mxu0 0.0
    %739 = vmatprep.subr.mxu0 0.0
    %740 = vmatpush1.msra.mxu0 0.0
    %741 = vmatprep.subr.mxu0 0.0
    %742 = vmatpush1.msra.mxu0 0.0
    %743 = vmatprep.subr.mxu0 0.0
    %744 = vmatpush1.msra.mxu0 0.0
    %745 = vmatprep.mubr.f32.mxu0 0.0
    %746 = vmatmul.mubr.f32.gmra.mrb[0].mxu0 %v679
    %v747 = vpop.f32.mrb[0].mxu0
    %v748 = vadd.f32 0.0, %v747
    %v749 = vpop.f32.mrb[0].mxu0
    %750 = vdwg.mxu0
    %751 = vrot.lane.b32.xlu0 %v165, 56
    %v752 = vpop.permute.xlu0 %751
    %v755 = vsel %vm171, %v674, 0
    %757 = vmatprep.subr.mxu0 0.0
    %758 = vmatpush1.msra.mxu0 %v752
    %759 = vmatprep.subr.mxu0 0.0
    %760 = vmatpush1.msra.mxu0 0.0
    %761 = vmatprep.subr.mxu0 0.0
    %762 = vmatpush1.msra.mxu0 0.0
    %763 = vmatprep.subr.mxu0 0.0
    %764 = vmatpush1.msra.mxu0 0.0
    %765 = vmatprep.subr.mxu0 0.0
    %766 = vmatpush1.msra.mxu0 0.0
    %767 = vmatprep.subr.mxu0 0.0
    %768 = vmatpush1.msra.mxu0 0.0
    %769 = vmatprep.subr.mxu0 0.0
    %770 = vmatpush1.msra.mxu0 0.0
    %771 = vmatprep.subr.mxu0 0.0
    %772 = vmatpush1.msra.mxu0 0.0
    %773 = vmatprep.subr.mxu0 0.0
    %774 = vmatpush1.msra.mxu0 0.0
    %775 = vmatprep.subr.mxu0 0.0
    %776 = vmatpush1.msra.mxu0 0.0
    %777 = vmatprep.subr.mxu0 0.0
    %778 = vmatpush1.msra.mxu0 0.0
    %779 = vmatprep.subr.mxu0 0.0
    %780 = vmatpush1.msra.mxu0 0.0
    %781 = vmatprep.subr.mxu0 0.0
    %782 = vmatpush1.msra.mxu0 0.0
    %783 = vmatprep.subr.mxu0 0.0
    %784 = vmatpush1.msra.mxu0 0.0
    %785 = vmatprep.subr.mxu0 0.0
    %786 = vmatpush1.msra.mxu0 0.0
    %787 = vmatprep.subr.mxu0 0.0
    %788 = vmatpush1.msra.mxu0 0.0
    %789 = vmatprep.subr.mxu0 0.0
    %790 = vmatpush1.msra.mxu0 0.0
    %791 = vmatprep.subr.mxu0 0.0
    %792 = vmatpush1.msra.mxu0 0.0
    %793 = vmatprep.subr.mxu0 0.0
    %794 = vmatpush1.msra.mxu0 0.0
    %795 = vmatprep.subr.mxu0 0.0
    %796 = vmatpush1.msra.mxu0 0.0
    %797 = vmatprep.subr.mxu0 0.0
    %798 = vmatpush1.msra.mxu0 0.0
    %799 = vmatprep.subr.mxu0 0.0
    %800 = vmatpush1.msra.mxu0 0.0
    %801 = vmatprep.subr.mxu0 0.0
    %802 = vmatpush1.msra.mxu0 0.0
    %803 = vmatprep.subr.mxu0 0.0
    %804 = vmatpush1.msra.mxu0 0.0
    %805 = vmatprep.subr.mxu0 0.0
    %806 = vmatpush1.msra.mxu0 0.0
    %807 = vmatprep.subr.mxu0 0.0
    %808 = vmatpush1.msra.mxu0 0.0
    %809 = vmatprep.subr.mxu0 0.0
    %810 = vmatpush1.msra.mxu0 0.0
    %811 = vmatprep.subr.mxu0 0.0
    %812 = vmatpush1.msra.mxu0 0.0
    %813 = vmatprep.subr.mxu0 0.0
    %814 = vmatpush1.msra.mxu0 0.0
    %815 = vmatprep.subr.mxu0 0.0
    %816 = vmatpush1.msra.mxu0 0.0
    %817 = vmatprep.subr.mxu0 0.0
    %818 = vmatpush1.msra.mxu0 0.0
    %819 = vmatprep.subr.mxu0 0.0
    %820 = vmatpush1.msra.mxu0 0.0
    %821 = vmatprep.mubr.f32.mxu0 0.0
    %822 = vmatmul.mubr.f32.gmra.mrb[0].mxu0 %v755
    %v823 = vpop.f32.mrb[0].mxu0
    %v824 = vadd.f32 0.0, %v823
    %v825 = vpop.f32.mrb[0].mxu0
    %826 = vdwg.mxu0
    %827 = vrot.lane.b32.xlu0 %v160, 112
    %v828 = vpop.permute.xlu0 %827
    %829 = vrot.lane.b32.xlu0 %v160, 80
    %v830 = vpop.permute.xlu0 %829
    %v831 = vsel %vm171, %v828, 0
    %v833 = vsel %vm171, %v830, 0
    %835 = vmatprep.subr.mxu0 0.0
    %836 = vmatpush1.xpose.msra.mxu0 %v833
    %837 = vmatprep.subr.mxu0 0.0
    %838 = vmatpush1.xpose.msra.mxu0 0.0
    %839 = vmatprep.subr.mxu0 0.0
    %840 = vmatpush1.xpose.msra.mxu0 0.0
    %841 = vmatprep.subr.mxu0 0.0
    %842 = vmatpush1.xpose.msra.mxu0 0.0
    %843 = vmatprep.subr.mxu0 0.0
    %844 = vmatpush1.xpose.msra.mxu0 0.0
    %845 = vmatprep.subr.mxu0 0.0
    %846 = vmatpush1.xpose.msra.mxu0 0.0
    %847 = vmatprep.subr.mxu0 0.0
    %848 = vmatpush1.xpose.msra.mxu0 0.0
    %849 = vmatprep.subr.mxu0 0.0
    %850 = vmatpush1.xpose.msra.mxu0 0.0
    %851 = vmatprep.subr.mxu0 0.0
    %852 = vmatpush1.xpose.msra.mxu0 0.0
    %853 = vmatprep.subr.mxu0 0.0
    %854 = vmatpush1.xpose.msra.mxu0 0.0
    %855 = vmatprep.subr.mxu0 0.0
    %856 = vmatpush1.xpose.msra.mxu0 0.0
    %857 = vmatprep.subr.mxu0 0.0
    %858 = vmatpush1.xpose.msra.mxu0 0.0
    %859 = vmatprep.subr.mxu0 0.0
    %860 = vmatpush1.xpose.msra.mxu0 0.0
    %861 = vmatprep.subr.mxu0 0.0
    %862 = vmatpush1.xpose.msra.mxu0 0.0
    %863 = vmatprep.subr.mxu0 0.0
    %864 = vmatpush1.xpose.msra.mxu0 0.0
    %865 = vmatprep.subr.mxu0 0.0
    %866 = vmatpush1.xpose.msra.mxu0 0.0
    %867 = vmatprep.subr.mxu0 0.0
    %868 = vmatpush1.xpose.msra.mxu0 0.0
    %869 = vmatprep.subr.mxu0 0.0
    %870 = vmatpush1.xpose.msra.mxu0 0.0
    %871 = vmatprep.subr.mxu0 0.0
    %872 = vmatpush1.xpose.msra.mxu0 0.0
    %873 = vmatprep.subr.mxu0 0.0
    %874 = vmatpush1.xpose.msra.mxu0 0.0
    %875 = vmatprep.subr.mxu0 0.0
    %876 = vmatpush1.xpose.msra.mxu0 0.0
    %877 = vmatprep.subr.mxu0 0.0
    %878 = vmatpush1.xpose.msra.mxu0 0.0
    %879 = vmatprep.subr.mxu0 0.0
    %880 = vmatpush1.xpose.msra.mxu0 0.0
    %881 = vmatprep.subr.mxu0 0.0
    %882 = vmatpush1.xpose.msra.mxu0 0.0
    %883 = vmatprep.subr.mxu0 0.0
    %884 = vmatpush1.xpose.msra.mxu0 0.0
    %885 = vmatprep.subr.mxu0 0.0
    %886 = vmatpush1.xpose.msra.mxu0 0.0
    %887 = vmatprep.subr.mxu0 0.0
    %888 = vmatpush1.xpose.msra.mxu0 0.0
    %889 = vmatprep.subr.mxu0 0.0
    %890 = vmatpush1.xpose.msra.mxu0 0.0
    %891 = vmatprep.subr.mxu0 0.0
    %892 = vmatpush1.xpose.msra.mxu0 0.0
    %893 = vmatprep.subr.mxu0 0.0
    %894 = vmatpush1.xpose.msra.mxu0 0.0
    %895 = vmatprep.subr.mxu0 0.0
    %896 = vmatpush1.xpose.msra.mxu0 0.0
    %897 = vmatprep.subr.mxu0 0.0
    %898 = vmatpush1.xpose.msra.mxu0 0.0
    %899 = vmatprep.mubr.f32.mxu0 0.0
    %900 = vmatmul.mubr.f32.gmra.mrb[0].mxu0 %v831
    %v901 = vpop.f32.mrb[0].mxu0
    %v902 = vadd.f32 0.0, %v901
    %v903 = vpop.f32.mrb[0].mxu0
    %904 = vdwg.mxu0
    %905 = vrot.lane.b32.xlu0 %v165, 112
    %v906 = vpop.permute.xlu0 %905
    %907 = vrot.lane.b32.xlu0 %v165, 80
    %v908 = vpop.permute.xlu0 %907
    %v909 = vsel %vm171, %v906, 0
    %v911 = vsel %vm171, %v908, 0
    %913 = vmatprep.subr.mxu0 0.0
    %914 = vmatpush1.xpose.msra.mxu0 %v911
    %915 = vmatprep.subr.mxu0 0.0
    %916 = vmatpush1.xpose.msra.mxu0 0.0
    %917 = vmatprep.subr.mxu0 0.0
    %918 = vmatpush1.xpose.msra.mxu0 0.0
    %919 = vmatprep.subr.mxu0 0.0
    %920 = vmatpush1.xpose.msra.mxu0 0.0
    %921 = vmatprep.subr.mxu0 0.0
    %922 = vmatpush1.xpose.msra.mxu0 0.0
    %923 = vmatprep.subr.mxu0 0.0
    %924 = vmatpush1.xpose.msra.mxu0 0.0
    %925 = vmatprep.subr.mxu0 0.0
    %926 = vmatpush1.xpose.msra.mxu0 0.0
    %927 = vmatprep.subr.mxu0 0.0
    %928 = vmatpush1.xpose.msra.mxu0 0.0
    %929 = vmatprep.subr.mxu0 0.0
    %930 = vmatpush1.xpose.msra.mxu0 0.0
    %931 = vmatprep.subr.mxu0 0.0
    %932 = vmatpush1.xpose.msra.mxu0 0.0
    %933 = vmatprep.subr.mxu0 0.0
    %934 = vmatpush1.xpose.msra.mxu0 0.0
    %935 = vmatprep.subr.mxu0 0.0
    %936 = vmatpush1.xpose.msra.mxu0 0.0
    %937 = vmatprep.subr.mxu0 0.0
    %938 = vmatpush1.xpose.msra.mxu0 0.0
    %939 = vmatprep.subr.mxu0 0.0
    %940 = vmatpush1.xpose.msra.mxu0 0.0
    %941 = vmatprep.subr.mxu0 0.0
    %942 = vmatpush1.xpose.msra.mxu0 0.0
    %943 = vmatprep.subr.mxu0 0.0
    %944 = vmatpush1.xpose.msra.mxu0 0.0
    %945 = vmatprep.subr.mxu0 0.0
    %946 = vmatpush1.xpose.msra.mxu0 0.0
    %947 = vmatprep.subr.mxu0 0.0
    %948 = vmatpush1.xpose.msra.mxu0 0.0
    %949 = vmatprep.subr.mxu0 0.0
    %950 = vmatpush1.xpose.msra.mxu0 0.0
    %951 = vmatprep.subr.mxu0 0.0
    %952 = vmatpush1.xpose.msra.mxu0 0.0
    %953 = vmatprep.subr.mxu0 0.0
    %954 = vmatpush1.xpose.msra.mxu0 0.0
    %955 = vmatprep.subr.mxu0 0.0
    %956 = vmatpush1.xpose.msra.mxu0 0.0
    %957 = vmatprep.subr.mxu0 0.0
    %958 = vmatpush1.xpose.msra.mxu0 0.0
    %959 = vmatprep.subr.mxu0 0.0
    %960 = vmatpush1.xpose.msra.mxu0 0.0
    %961 = vmatprep.subr.mxu0 0.0
    %962 = vmatpush1.xpose.msra.mxu0 0.0
    %963 = vmatprep.subr.mxu0 0.0
    %964 = vmatpush1.xpose.msra.mxu0 0.0
    %965 = vmatprep.subr.mxu0 0.0
    %966 = vmatpush1.xpose.msra.mxu0 0.0
    %967 = vmatprep.subr.mxu0 0.0
    %968 = vmatpush1.xpose.msra.mxu0 0.0
    %969 = vmatprep.subr.mxu0 0.0
    %970 = vmatpush1.xpose.msra.mxu0 0.0
    %971 = vmatprep.subr.mxu0 0.0
    %972 = vmatpush1.xpose.msra.mxu0 0.0
    %973 = vmatprep.subr.mxu0 0.0
    %974 = vmatpush1.xpose.msra.mxu0 0.0
    %975 = vmatprep.subr.mxu0 0.0
    %976 = vmatpush1.xpose.msra.mxu0 0.0
    %977 = vmatprep.mubr.f32.mxu0 0.0
    %978 = vmatmul.mubr.f32.gmra.mrb[0].mxu0 %v909
    %v979 = vpop.f32.mrb[0].mxu0
    %v980 = vadd.f32 0.0, %v979
    %v981 = vpop.f32.mrb[0].mxu0
    %982 = vdwg.mxu0
    %v983 = vsel %vm171, %v902, -inf
    %984 = vmax.xlane.f32.xlu0 %v983
    %v985 = vpop.xlane.xlu0 %984
    %v986 = vsel %vm171, %v980, -inf
    %987 = vmax.xlane.f32.xlu0 %v986
    %v988 = vpop.xlane.xlu0 %987
    %v989 = vsub.f32 %v902, %v985
    %v990 = vsub.f32 %v980, %v988
    %v991 = vmul.f32 %v989, 1.442695
    %v992 = vpow.pop %v991
    %v993 = vmul.f32 %v990, 1.442695
    %v994 = vpow.pop %v993
    %v995 = vsel %vm171, %v992, 0.0
    %996 = vadd.xlane.f32.xlu0 %v995
    %v997 = vpop.xlane.xlu0 %996
    %v998 = vsel %vm171, %v994, 0.0
    %999 = vadd.xlane.f32.xlu0 %v998
    %v1000 = vpop.xlane.xlu0 %999
    %v1001 = vrcp.pop %v997
    %v1002 = vrcp.pop %v1000
    %v1003 = vmul.f32 %v992, %v1001
    %v1004 = vmul.f32 %v994, %v1002
    %1005 = vrot.lane.b32.xlu0 %v160, 48
    %v1006 = vpop.permute.xlu0 %1005
    %v1009 = vsel %vm171, %v1003, 0
    %1011 = vmatprep.subr.mxu0 0.0
    %1012 = vmatpush1.msra.mxu0 %v1006
    %1013 = vmatprep.subr.mxu0 0.0
    %1014 = vmatpush1.msra.mxu0 0.0
    %1015 = vmatprep.subr.mxu0 0.0
    %1016 = vmatpush1.msra.mxu0 0.0
    %1017 = vmatprep.subr.mxu0 0.0
    %1018 = vmatpush1.msra.mxu0 0.0
    %1019 = vmatprep.subr.mxu0 0.0
    %1020 = vmatpush1.msra.mxu0 0.0
    %1021 = vmatprep.subr.mxu0 0.0
    %1022 = vmatpush1.msra.mxu0 0.0
    %1023 = vmatprep.subr.mxu0 0.0
    %1024 = vmatpush1.msra.mxu0 0.0
    %1025 = vmatprep.subr.mxu0 0.0
    %1026 = vmatpush1.msra.mxu0 0.0
    %1027 = vmatprep.subr.mxu0 0.0
    %1028 = vmatpush1.msra.mxu0 0.0
    %1029 = vmatprep.subr.mxu0 0.0
    %1030 = vmatpush1.msra.mxu0 0.0
    %1031 = vmatprep.subr.mxu0 0.0
    %1032 = vmatpush1.msra.mxu0 0.0
    %1033 = vmatprep.subr.mxu0 0.0
    %1034 = vmatpush1.msra.mxu0 0.0
    %1035 = vmatprep.subr.mxu0 0.0
    %1036 = vmatpush1.msra.mxu0 0.0
    %1037 = vmatprep.subr.mxu0 0.0
    %1038 = vmatpush1.msra.mxu0 0.0
    %1039 = vmatprep.subr.mxu0 0.0
    %1040 = vmatpush1.msra.mxu0 0.0
    %1041 = vmatprep.subr.mxu0 0.0
    %1042 = vmatpush1.msra.mxu0 0.0
    %1043 = vmatprep.subr.mxu0 0.0
    %1044 = vmatpush1.msra.mxu0 0.0
    %1045 = vmatprep.subr.mxu0 0.0
    %1046 = vmatpush1.msra.mxu0 0.0
    %1047 = vmatprep.subr.mxu0 0.0
    %1048 = vmatpush1.msra.mxu0 0.0
    %1049 = vmatprep.subr.mxu0 0.0
    %1050 = vmatpush1.msra.mxu0 0.0
    %1051 = vmatprep.subr.mxu0 0.0
    %1052 = vmatpush1.msra.mxu0 0.0
    %1053 = vmatprep.subr.mxu0 0.0
    %1054 = vmatpush1.msra.mxu0 0.0
    %1055 = vmatprep.subr.mxu0 0.0
    %1056 = vmatpush1.msra.mxu0 0.0
    %1057 = vmatprep.subr.mxu0 0.0
    %1058 = vmatpush1.msra.mxu0 0.0
    %1059 = vmatprep.subr.mxu0 0.0
    %1060 = vmatpush1.msra.mxu0 0.0
    %1061 = vmatprep.subr.mxu0 0.0
    %1062 = vmatpush1.msra.mxu0 0.0
    %1063 = vmatprep.subr.mxu0 0.0
    %1064 = vmatpush1.msra.mxu0 0.0
    %1065 = vmatprep.subr.mxu0 0.0
    %1066 = vmatpush1.msra.mxu0 0.0
    %1067 = vmatprep.subr.mxu0 0.0
    %1068 = vmatpush1.msra.mxu0 0.0
    %1069 = vmatprep.subr.mxu0 0.0
    %1070 = vmatpush1.msra.mxu0 0.0
    %1071 = vmatprep.subr.mxu0 0.0
    %1072 = vmatpush1.msra.mxu0 0.0
    %1073 = vmatprep.subr.mxu0 0.0
    %1074 = vmatpush1.msra.mxu0 0.0
    %1075 = vmatprep.mubr.f32.mxu0 0.0
    %1076 = vmatmul.mubr.f32.gmra.mrb[0].mxu0 %v1009
    %v1077 = vpop.f32.mrb[0].mxu0
    %v1078 = vadd.f32 0.0, %v1077
    %v1079 = vpop.f32.mrb[0].mxu0
    %1080 = vdwg.mxu0
    %1081 = vrot.lane.b32.xlu0 %v165, 48
    %v1082 = vpop.permute.xlu0 %1081
    %v1085 = vsel %vm171, %v1004, 0
    %1087 = vmatprep.subr.mxu0 0.0
    %1088 = vmatpush1.msra.mxu0 %v1082
    %1089 = vmatprep.subr.mxu0 0.0
    %1090 = vmatpush1.msra.mxu0 0.0
    %1091 = vmatprep.subr.mxu0 0.0
    %1092 = vmatpush1.msra.mxu0 0.0
    %1093 = vmatprep.subr.mxu0 0.0
    %1094 = vmatpush1.msra.mxu0 0.0
    %1095 = vmatprep.subr.mxu0 0.0
    %1096 = vmatpush1.msra.mxu0 0.0
    %1097 = vmatprep.subr.mxu0 0.0
    %1098 = vmatpush1.msra.mxu0 0.0
    %1099 = vmatprep.subr.mxu0 0.0
    %1100 = vmatpush1.msra.mxu0 0.0
    %1101 = vmatprep.subr.mxu0 0.0
    %1102 = vmatpush1.msra.mxu0 0.0
    %1103 = vmatprep.subr.mxu0 0.0
    %1104 = vmatpush1.msra.mxu0 0.0
    %1105 = vmatprep.subr.mxu0 0.0
    %1106 = vmatpush1.msra.mxu0 0.0
    %1107 = vmatprep.subr.mxu0 0.0
    %1108 = vmatpush1.msra.mxu0 0.0
    %1109 = vmatprep.subr.mxu0 0.0
    %1110 = vmatpush1.msra.mxu0 0.0
    %1111 = vmatprep.subr.mxu0 0.0
    %1112 = vmatpush1.msra.mxu0 0.0
    %1113 = vmatprep.subr.mxu0 0.0
    %1114 = vmatpush1.msra.mxu0 0.0
    %1115 = vmatprep.subr.mxu0 0.0
    %1116 = vmatpush1.msra.mxu0 0.0
    %1117 = vmatprep.subr.mxu0 0.0
    %1118 = vmatpush1.msra.mxu0 0.0
    %1119 = vmatprep.subr.mxu0 0.0
    %1120 = vmatpush1.msra.mxu0 0.0
    %1121 = vmatprep.subr.mxu0 0.0
    %1122 = vmatpush1.msra.mxu0 0.0
    %1123 = vmatprep.subr.mxu0 0.0
    %1124 = vmatpush1.msra.mxu0 0.0
    %1125 = vmatprep.subr.mxu0 0.0
    %1126 = vmatpush1.msra.mxu0 0.0
    %1127 = vmatprep.subr.mxu0 0.0
    %1128 = vmatpush1.msra.mxu0 0.0
    %1129 = vmatprep.subr.mxu0 0.0
    %1130 = vmatpush1.msra.mxu0 0.0
    %1131 = vmatprep.subr.mxu0 0.0
    %1132 = vmatpush1.msra.mxu0 0.0
    %1133 = vmatprep.subr.mxu0 0.0
    %1134 = vmatpush1.msra.mxu0 0.0
    %1135 = vmatprep.subr.mxu0 0.0
    %1136 = vmatpush1.msra.mxu0 0.0
    %1137 = vmatprep.subr.mxu0 0.0
    %1138 = vmatpush1.msra.mxu0 0.0
    %1139 = vmatprep.subr.mxu0 0.0
    %1140 = vmatpush1.msra.mxu0 0.0
    %1141 = vmatprep.subr.mxu0 0.0
    %1142 = vmatpush1.msra.mxu0 0.0
    %1143 = vmatprep.subr.mxu0 0.0
    %1144 = vmatpush1.msra.mxu0 0.0
    %1145 = vmatprep.subr.mxu0 0.0
    %1146 = vmatpush1.msra.mxu0 0.0
    %1147 = vmatprep.subr.mxu0 0.0
    %1148 = vmatpush1.msra.mxu0 0.0
    %1149 = vmatprep.subr.mxu0 0.0
    %1150 = vmatpush1.msra.mxu0 0.0
    %1151 = vmatprep.mubr.f32.mxu0 0.0
    %1152 = vmatmul.mubr.f32.gmra.mrb[0].mxu0 %v1085
    %v1153 = vpop.f32.mrb[0].mxu0
    %v1154 = vadd.f32 0.0, %v1153
    %v1155 = vpop.f32.mrb[0].mxu0
    %1156 = vdwg.mxu0
    %1157 = vrot.lane.b32.xlu0 %v160, 104
    %v1158 = vpop.permute.xlu0 %1157
    %1159 = vrot.lane.b32.xlu0 %v160, 72
    %v1160 = vpop.permute.xlu0 %1159
    %v1161 = vsel %vm171, %v1158, 0
    %v1163 = vsel %vm171, %v1160, 0
    %1165 = vmatprep.subr.mxu0 0.0
    %1166 = vmatpush1.xpose.msra.mxu0 %v1163
    %1167 = vmatprep.subr.mxu0 0.0
    %1168 = vmatpush1.xpose.msra.mxu0 0.0
    %1169 = vmatprep.subr.mxu0 0.0
    %1170 = vmatpush1.xpose.msra.mxu0 0.0
    %1171 = vmatprep.subr.mxu0 0.0
    %1172 = vmatpush1.xpose.msra.mxu0 0.0
    %1173 = vmatprep.subr.mxu0 0.0
    %1174 = vmatpush1.xpose.msra.mxu0 0.0
    %1175 = vmatprep.subr.mxu0 0.0
    %1176 = vmatpush1.xpose.msra.mxu0 0.0
    %1177 = vmatprep.subr.mxu0 0.0
    %1178 = vmatpush1.xpose.msra.mxu0 0.0
    %1179 = vmatprep.subr.mxu0 0.0
    %1180 = vmatpush1.xpose.msra.mxu0 0.0
    %1181 = vmatprep.subr.mxu0 0.0
    %1182 = vmatpush1.xpose.msra.mxu0 0.0
    %1183 = vmatprep.subr.mxu0 0.0
    %1184 = vmatpush1.xpose.msra.mxu0 0.0
    %1185 = vmatprep.subr.mxu0 0.0
    %1186 = vmatpush1.xpose.msra.mxu0 0.0
    %1187 = vmatprep.subr.mxu0 0.0
    %1188 = vmatpush1.xpose.msra.mxu0 0.0
    %1189 = vmatprep.subr.mxu0 0.0
    %1190 = vmatpush1.xpose.msra.mxu0 0.0
    %1191 = vmatprep.subr.mxu0 0.0
    %1192 = vmatpush1.xpose.msra.mxu0 0.0
    %1193 = vmatprep.subr.mxu0 0.0
    %1194 = vmatpush1.xpose.msra.mxu0 0.0
    %1195 = vmatprep.subr.mxu0 0.0
    %1196 = vmatpush1.xpose.msra.mxu0 0.0
    %1197 = vmatprep.subr.mxu0 0.0
    %1198 = vmatpush1.xpose.msra.mxu0 0.0
    %1199 = vmatprep.subr.mxu0 0.0
    %1200 = vmatpush1.xpose.msra.mxu0 0.0
    %1201 = vmatprep.subr.mxu0 0.0
    %1202 = vmatpush1.xpose.msra.mxu0 0.0
    %1203 = vmatprep.subr.mxu0 0.0
    %1204 = vmatpush1.xpose.msra.mxu0 0.0
    %1205 = vmatprep.subr.mxu0 0.0
    %1206 = vmatpush1.xpose.msra.mxu0 0.0
    %1207 = vmatprep.subr.mxu0 0.0
    %1208 = vmatpush1.xpose.msra.mxu0 0.0
    %1209 = vmatprep.subr.mxu0 0.0
    %1210 = vmatpush1.xpose.msra.mxu0 0.0
    %1211 = vmatprep.subr.mxu0 0.0
    %1212 = vmatpush1.xpose.msra.mxu0 0.0
    %1213 = vmatprep.subr.mxu0 0.0
    %1214 = vmatpush1.xpose.msra.mxu0 0.0
    %1215 = vmatprep.subr.mxu0 0.0
    %1216 = vmatpush1.xpose.msra.mxu0 0.0
    %1217 = vmatprep.subr.mxu0 0.0
    %1218 = vmatpush1.xpose.msra.mxu0 0.0
    %1219 = vmatprep.subr.mxu0 0.0
    %1220 = vmatpush1.xpose.msra.mxu0 0.0
    %1221 = vmatprep.subr.mxu0 0.0
    %1222 = vmatpush1.xpose.msra.mxu0 0.0
    %1223 = vmatprep.subr.mxu0 0.0
    %1224 = vmatpush1.xpose.msra.mxu0 0.0
    %1225 = vmatprep.subr.mxu0 0.0
    %1226 = vmatpush1.xpose.msra.mxu0 0.0
    %1227 = vmatprep.subr.mxu0 0.0
    %1228 = vmatpush1.xpose.msra.mxu0 0.0
    %1229 = vmatprep.mubr.f32.mxu0 0.0
    %1230 = vmatmul.mubr.f32.gmra.mrb[0].mxu0 %v1161
    %v1231 = vpop.f32.mrb[0].mxu0
    %v1232 = vadd.f32 0.0, %v1231
    %v1233 = vpop.f32.mrb[0].mxu0
    %1234 = vdwg.mxu0
    %1235 = vrot.lane.b32.xlu0 %v165, 104
    %v1236 = vpop.permute.xlu0 %1235
    %1237 = vrot.lane.b32.xlu0 %v165, 72
    %v1238 = vpop.permute.xlu0 %1237
    %v1239 = vsel %vm171, %v1236, 0
    %v1241 = vsel %vm171, %v1238, 0
    %1243 = vmatprep.subr.mxu0 0.0
    %1244 = vmatpush1.xpose.msra.mxu0 %v1241
    %1245 = vmatprep.subr.mxu0 0.0
    %1246 = vmatpush1.xpose.msra.mxu0 0.0
    %1247 = vmatprep.subr.mxu0 0.0
    %1248 = vmatpush1.xpose.msra.mxu0 0.0
    %1249 = vmatprep.subr.mxu0 0.0
    %1250 = vmatpush1.xpose.msra.mxu0 0.0
    %1251 = vmatprep.subr.mxu0 0.0
    %1252 = vmatpush1.xpose.msra.mxu0 0.0
    %1253 = vmatprep.subr.mxu0 0.0
    %1254 = vmatpush1.xpose.msra.mxu0 0.0
    %1255 = vmatprep.subr.mxu0 0.0
    %1256 = vmatpush1.xpose.msra.mxu0 0.0
    %1257 = vmatprep.subr.mxu0 0.0
    %1258 = vmatpush1.xpose.msra.mxu0 0.0
    %1259 = vmatprep.subr.mxu0 0.0
    %1260 = vmatpush1.xpose.msra.mxu0 0.0
    %1261 = vmatprep.subr.mxu0 0.0
    %1262 = vmatpush1.xpose.msra.mxu0 0.0
    %1263 = vmatprep.subr.mxu0 0.0
    %1264 = vmatpush1.xpose.msra.mxu0 0.0
    %1265 = vmatprep.subr.mxu0 0.0
    %1266 = vmatpush1.xpose.msra.mxu0 0.0
    %1267 = vmatprep.subr.mxu0 0.0
    %1268 = vmatpush1.xpose.msra.mxu0 0.0
    %1269 = vmatprep.subr.mxu0 0.0
    %1270 = vmatpush1.xpose.msra.mxu0 0.0
    %1271 = vmatprep.subr.mxu0 0.0
    %1272 = vmatpush1.xpose.msra.mxu0 0.0
    %1273 = vmatprep.subr.mxu0 0.0
    %1274 = vmatpush1.xpose.msra.mxu0 0.0
    %1275 = vmatprep.subr.mxu0 0.0
    %1276 = vmatpush1.xpose.msra.mxu0 0.0
    %1277 = vmatprep.subr.mxu0 0.0
    %1278 = vmatpush1.xpose.msra.mxu0 0.0
    %1279 = vmatprep.subr.mxu0 0.0
    %1280 = vmatpush1.xpose.msra.mxu0 0.0
    %1281 = vmatprep.subr.mxu0 0.0
    %1282 = vmatpush1.xpose.msra.mxu0 0.0
    %1283 = vmatprep.subr.mxu0 0.0
    %1284 = vmatpush1.xpose.msra.mxu0 0.0
    %1285 = vmatprep.subr.mxu0 0.0
    %1286 = vmatpush1.xpose.msra.mxu0 0.0
    %1287 = vmatprep.subr.mxu0 0.0
    %1288 = vmatpush1.xpose.msra.mxu0 0.0
    %1289 = vmatprep.subr.mxu0 0.0
    %1290 = vmatpush1.xpose.msra.mxu0 0.0
    %1291 = vmatprep.subr.mxu0 0.0
    %1292 = vmatpush1.xpose.msra.mxu0 0.0
    %1293 = vmatprep.subr.mxu0 0.0
    %1294 = vmatpush1.xpose.msra.mxu0 0.0
    %1295 = vmatprep.subr.mxu0 0.0
    %1296 = vmatpush1.xpose.msra.mxu0 0.0
    %1297 = vmatprep.subr.mxu0 0.0
    %1298 = vmatpush1.xpose.msra.mxu0 0.0
    %1299 = vmatprep.subr.mxu0 0.0
    %1300 = vmatpush1.xpose.msra.mxu0 0.0
    %1301 = vmatprep.subr.mxu0 0.0
    %1302 = vmatpush1.xpose.msra.mxu0 0.0
    %1303 = vmatprep.subr.mxu0 0.0
    %1304 = vmatpush1.xpose.msra.mxu0 0.0
    %1305 = vmatprep.subr.mxu0 0.0
    %1306 = vmatpush1.xpose.msra.mxu0 0.0
    %1307 = vmatprep.mubr.f32.mxu0 0.0
    %1308 = vmatmul.mubr.f32.gmra.mrb[0].mxu0 %v1239
    %v1309 = vpop.f32.mrb[0].mxu0
    %v1310 = vadd.f32 0.0, %v1309
    %v1311 = vpop.f32.mrb[0].mxu0
    %1312 = vdwg.mxu0
    %v1313 = vsel %vm171, %v1232, -inf
    %1314 = vmax.xlane.f32.xlu0 %v1313
    %v1315 = vpop.xlane.xlu0 %1314
    %v1316 = vsel %vm171, %v1310, -inf
    %1317 = vmax.xlane.f32.xlu0 %v1316
    %v1318 = vpop.xlane.xlu0 %1317
    %v1319 = vsub.f32 %v1232, %v1315
    %v1320 = vsub.f32 %v1310, %v1318
    %v1321 = vmul.f32 %v1319, 1.442695
    %v1322 = vpow.pop %v1321
    %v1323 = vmul.f32 %v1320, 1.442695
    %v1324 = vpow.pop %v1323
    %v1325 = vsel %vm171, %v1322, 0.0
    %1326 = vadd.xlane.f32.xlu0 %v1325
    %v1327 = vpop.xlane.xlu0 %1326
    %v1328 = vsel %vm171, %v1324, 0.0
    %1329 = vadd.xlane.f32.xlu0 %v1328
    %v1330 = vpop.xlane.xlu0 %1329
    %v1331 = vrcp.pop %v1327
    %v1332 = vrcp.pop %v1330
    %v1333 = vmul.f32 %v1322, %v1331
    %v1334 = vmul.f32 %v1324, %v1332
    %1335 = vrot.lane.b32.xlu0 %v160, 40
    %v1336 = vpop.permute.xlu0 %1335
    %v1339 = vsel %vm171, %v1333, 0
    %1341 = vmatprep.subr.mxu0 0.0
    %1342 = vmatpush1.msra.mxu0 %v1336
    %1343 = vmatprep.subr.mxu0 0.0
    %1344 = vmatpush1.msra.mxu0 0.0
    %1345 = vmatprep.subr.mxu0 0.0
    %1346 = vmatpush1.msra.mxu0 0.0
    %1347 = vmatprep.subr.mxu0 0.0
    %1348 = vmatpush1.msra.mxu0 0.0
    %1349 = vmatprep.subr.mxu0 0.0
    %1350 = vmatpush1.msra.mxu0 0.0
    %1351 = vmatprep.subr.mxu0 0.0
    %1352 = vmatpush1.msra.mxu0 0.0
    %1353 = vmatprep.subr.mxu0 0.0
    %1354 = vmatpush1.msra.mxu0 0.0
    %1355 = vmatprep.subr.mxu0 0.0
    %1356 = vmatpush1.msra.mxu0 0.0
    %1357 = vmatprep.subr.mxu0 0.0
    %1358 = vmatpush1.msra.mxu0 0.0
    %1359 = vmatprep.subr.mxu0 0.0
    %1360 = vmatpush1.msra.mxu0 0.0
    %1361 = vmatprep.subr.mxu0 0.0
    %1362 = vmatpush1.msra.mxu0 0.0
    %1363 = vmatprep.subr.mxu0 0.0
    %1364 = vmatpush1.msra.mxu0 0.0
    %1365 = vmatprep.subr.mxu0 0.0
    %1366 = vmatpush1.msra.mxu0 0.0
    %1367 = vmatprep.subr.mxu0 0.0
    %1368 = vmatpush1.msra.mxu0 0.0
    %1369 = vmatprep.subr.mxu0 0.0
    %1370 = vmatpush1.msra.mxu0 0.0
    %1371 = vmatprep.subr.mxu0 0.0
    %1372 = vmatpush1.msra.mxu0 0.0
    %1373 = vmatprep.subr.mxu0 0.0
    %1374 = vmatpush1.msra.mxu0 0.0
    %1375 = vmatprep.subr.mxu0 0.0
    %1376 = vmatpush1.msra.mxu0 0.0
    %1377 = vmatprep.subr.mxu0 0.0
    %1378 = vmatpush1.msra.mxu0 0.0
    %1379 = vmatprep.subr.mxu0 0.0
    %1380 = vmatpush1.msra.mxu0 0.0
    %1381 = vmatprep.subr.mxu0 0.0
    %1382 = vmatpush1.msra.mxu0 0.0
    %1383 = vmatprep.subr.mxu0 0.0
    %1384 = vmatpush1.msra.mxu0 0.0
    %1385 = vmatprep.subr.mxu0 0.0
    %1386 = vmatpush1.msra.mxu0 0.0
    %1387 = vmatprep.subr.mxu0 0.0
    %1388 = vmatpush1.msra.mxu0 0.0
    %1389 = vmatprep.subr.mxu0 0.0
    %1390 = vmatpush1.msra.mxu0 0.0
    %1391 = vmatprep.subr.mxu0 0.0
    %1392 = vmatpush1.msra.mxu0 0.0
    %1393 = vmatprep.subr.mxu0 0.0
    %1394 = vmatpush1.msra.mxu0 0.0
    %1395 = vmatprep.subr.mxu0 0.0
    %1396 = vmatpush1.msra.mxu0 0.0
    %1397 = vmatprep.subr.mxu0 0.0
    %1398 = vmatpush1.msra.mxu0 0.0
    %1399 = vmatprep.subr.mxu0 0.0
    %1400 = vmatpush1.msra.mxu0 0.0
    %1401 = vmatprep.subr.mxu0 0.0
    %1402 = vmatpush1.msra.mxu0 0.0
    %1403 = vmatprep.subr.mxu0 0.0
    %1404 = vmatpush1.msra.mxu0 0.0
    %1405 = vmatprep.mubr.f32.mxu0 0.0
    %1406 = vmatmul.mubr.f32.gmra.mrb[0].mxu0 %v1339
    %v1407 = vpop.f32.mrb[0].mxu0
    %v1408 = vadd.f32 0.0, %v1407
    %v1409 = vpop.f32.mrb[0].mxu0
    %1410 = vdwg.mxu0
    %1411 = vrot.lane.b32.xlu0 %v165, 40
    %v1412 = vpop.permute.xlu0 %1411
    %v1415 = vsel %vm171, %v1334, 0
    %1417 = vmatprep.subr.mxu0 0.0
    %1418 = vmatpush1.msra.mxu0 %v1412
    %1419 = vmatprep.subr.mxu0 0.0
    %1420 = vmatpush1.msra.mxu0 0.0
    %1421 = vmatprep.subr.mxu0 0.0
    %1422 = vmatpush1.msra.mxu0 0.0
    %1423 = vmatprep.subr.mxu0 0.0
    %1424 = vmatpush1.msra.mxu0 0.0
    %1425 = vmatprep.subr.mxu0 0.0
    %1426 = vmatpush1.msra.mxu0 0.0
    %1427 = vmatprep.subr.mxu0 0.0
    %1428 = vmatpush1.msra.mxu0 0.0
    %1429 = vmatprep.subr.mxu0 0.0
    %1430 = vmatpush1.msra.mxu0 0.0
    %1431 = vmatprep.subr.mxu0 0.0
    %1432 = vmatpush1.msra.mxu0 0.0
    %1433 = vmatprep.subr.mxu0 0.0
    %1434 = vmatpush1.msra.mxu0 0.0
    %1435 = vmatprep.subr.mxu0 0.0
    %1436 = vmatpush1.msra.mxu0 0.0
    %1437 = vmatprep.subr.mxu0 0.0
    %1438 = vmatpush1.msra.mxu0 0.0
    %1439 = vmatprep.subr.mxu0 0.0
    %1440 = vmatpush1.msra.mxu0 0.0
    %1441 = vmatprep.subr.mxu0 0.0
    %1442 = vmatpush1.msra.mxu0 0.0
    %1443 = vmatprep.subr.mxu0 0.0
    %1444 = vmatpush1.msra.mxu0 0.0
    %1445 = vmatprep.subr.mxu0 0.0
    %1446 = vmatpush1.msra.mxu0 0.0
    %1447 = vmatprep.subr.mxu0 0.0
    %1448 = vmatpush1.msra.mxu0 0.0
    %1449 = vmatprep.subr.mxu0 0.0
    %1450 = vmatpush1.msra.mxu0 0.0
    %1451 = vmatprep.subr.mxu0 0.0
    %1452 = vmatpush1.msra.mxu0 0.0
    %1453 = vmatprep.subr.mxu0 0.0
    %1454 = vmatpush1.msra.mxu0 0.0
    %1455 = vmatprep.subr.mxu0 0.0
    %1456 = vmatpush1.msra.mxu0 0.0
    %1457 = vmatprep.subr.mxu0 0.0
    %1458 = vmatpush1.msra.mxu0 0.0
    %1459 = vmatprep.subr.mxu0 0.0
    %1460 = vmatpush1.msra.mxu0 0.0
    %1461 = vmatprep.subr.mxu0 0.0
    %1462 = vmatpush1.msra.mxu0 0.0
    %1463 = vmatprep.subr.mxu0 0.0
    %1464 = vmatpush1.msra.mxu0 0.0
    %1465 = vmatprep.subr.mxu0 0.0
    %1466 = vmatpush1.msra.mxu0 0.0
    %1467 = vmatprep.subr.mxu0 0.0
    %1468 = vmatpush1.msra.mxu0 0.0
    %1469 = vmatprep.subr.mxu0 0.0
    %1470 = vmatpush1.msra.mxu0 0.0
    %1471 = vmatprep.subr.mxu0 0.0
    %1472 = vmatpush1.msra.mxu0 0.0
    %1473 = vmatprep.subr.mxu0 0.0
    %1474 = vmatpush1.msra.mxu0 0.0
    %1475 = vmatprep.subr.mxu0 0.0
    %1476 = vmatpush1.msra.mxu0 0.0
    %1477 = vmatprep.subr.mxu0 0.0
    %1478 = vmatpush1.msra.mxu0 0.0
    %1479 = vmatprep.subr.mxu0 0.0
    %1480 = vmatpush1.msra.mxu0 0.0
    %1481 = vmatprep.mubr.f32.mxu0 0.0
    %1482 = vmatmul.mubr.f32.gmra.mrb[0].mxu0 %v1415
    %v1483 = vpop.f32.mrb[0].mxu0
    %v1484 = vadd.f32 0.0, %v1483
    %v1485 = vpop.f32.mrb[0].mxu0
    %1486 = vdwg.mxu0
    %1487 = vrot.lane.b32.xlu0 %v673, 8
    %v1488 = vpop.permute.xlu0 %1487
    %1489 = vrot.lane.b32.xlu0 %v674, 8
    %v1490 = vpop.permute.xlu0 %1489
    %1493 = vrot.lane.b32.xlu0 %v1003, 16
    %v1494 = vpop.permute.xlu0 %1493
    %1495 = vrot.lane.b32.xlu0 %v1004, 16
    %v1496 = vpop.permute.xlu0 %1495
    %1499 = vrot.lane.b32.xlu0 %v1333, 24
    %v1500 = vpop.permute.xlu0 %1499
    %1501 = vrot.lane.b32.xlu0 %v1334, 24
    %v1502 = vpop.permute.xlu0 %1501
    %v1505 = vsel %vm171, %v343, %v1488
    %v1506 = vsel %vm171, %v344, %v1490
    %vm1507 = vcmask 130048
    %v1508 = vsel %vm1507, %v1505, %v1494
    %v1509 = vsel %vm1507, %v1506, %v1496
    %vm1510 = vcmask 195584
    %v1511 = vsel %vm1510, %v1508, %v1500
    %v1512 = vsel %vm1510, %v1509, %v1502
    %vm1513 = vcmask 261120
    %1514 = vst.msk [vmem:[#allocation9] sm:$0xff] %vm1513, %v1511
    %1515 = vst.msk [vmem:[#allocation9 + $0x8] sm:$0xff] %vm1513, %v1512
    %1518 = vrot.lane.b32.xlu0 %v748, 8
    %v1519 = vpop.permute.xlu0 %1518
    %1520 = vrot.lane.b32.xlu0 %v824, 8
    %v1521 = vpop.permute.xlu0 %1520
    %1526 = vrot.lane.b32.xlu0 %v1078, 16
    %v1527 = vpop.permute.xlu0 %1526
    %1528 = vrot.lane.b32.xlu0 %v1154, 16
    %v1529 = vpop.permute.xlu0 %1528
    %1534 = vrot.lane.b32.xlu0 %v1408, 24
    %v1535 = vpop.permute.xlu0 %1534
    %1536 = vrot.lane.b32.xlu0 %v1484, 24
    %v1537 = vpop.permute.xlu0 %1536
    %v1540 = vsel %vm171, %v418, %v1519
    %v1541 = vsel %vm171, %v494, %v1521
    %v1542 = vsel %vm1507, %v1540, %v1527
    %v1543 = vsel %vm1507, %v1541, %v1529
    %v1544 = vsel %vm1510, %v1542, %v1535
    %v1545 = vsel %vm1510, %v1543, %v1537
    %v1546 = vld [vmem:[#allocation7] sm:$0xff]
    %v1547 = vld [vmem:[#allocation7 + $0x8] sm:$0xff]
    %v1548 = vld [vmem:[#allocation7 + $0x10] sm:$0xff]
    %v1549 = vld [vmem:[#allocation7 + $0x18] sm:$0xff]
    %v1550 = vld [vmem:[%s4] sm:$0x1]
    %v1552 = vlaneseq
    %v1553 = vshrl.u32 %v1552, 7
    %v1554 = vsub.s32 0, %v1553
    %v1555 = vrot.slane %v1550, %v1554
    %v1558 = vsel %vm1513, %v1544, 0
    %v1561 = vsel %vm1513, %v1545, 0
    %1563 = vmatprep.subr.mxu0 0.0
    %1564 = vmatpush1.msra.mxu0 %v1546
    %1565 = vmatprep.subr.mxu0 0.0
    %1566 = vmatpush1.msra.mxu0 %v1547
    %1567 = vmatprep.subr.mxu0 0.0
    %1568 = vmatpush1.msra.mxu0 %v1548
    %1569 = vmatprep.subr.mxu0 0.0
    %1570 = vmatpush1.msra.mxu0 %v1549
    %1571 = vmatprep.subr.mxu0 0.0
    %1572 = vmatpush1.msra.mxu0 0.0
    %1573 = vmatprep.subr.mxu0 0.0
    %1574 = vmatpush1.msra.mxu0 0.0
    %1575 = vmatprep.subr.mxu0 0.0
    %1576 = vmatpush1.msra.mxu0 0.0
    %1577 = vmatprep.subr.mxu0 0.0
    %1578 = vmatpush1.msra.mxu0 0.0
    %1579 = vmatprep.subr.mxu0 0.0
    %1580 = vmatpush1.msra.mxu0 0.0
    %1581 = vmatprep.subr.mxu0 0.0
    %1582 = vmatpush1.msra.mxu0 0.0
    %1583 = vmatprep.subr.mxu0 0.0
    %1584 = vmatpush1.msra.mxu0 0.0
    %1585 = vmatprep.subr.mxu0 0.0
    %1586 = vmatpush1.msra.mxu0 0.0
    %1587 = vmatprep.subr.mxu0 0.0
    %1588 = vmatpush1.msra.mxu0 0.0
    %1589 = vmatprep.subr.mxu0 0.0
    %1590 = vmatpush1.msra.mxu0 0.0
    %1591 = vmatprep.subr.mxu0 0.0
    %1592 = vmatpush1.msra.mxu0 0.0
    %1593 = vmatprep.subr.mxu0 0.0
    %1594 = vmatpush1.msra.mxu0 0.0
    %1595 = vmatprep.subr.mxu0 0.0
    %1596 = vmatpush1.msra.mxu0 0.0
    %1597 = vmatprep.subr.mxu0 0.0
    %1598 = vmatpush1.msra.mxu0 0.0
    %1599 = vmatprep.subr.mxu0 0.0
    %1600 = vmatpush1.msra.mxu0 0.0
    %1601 = vmatprep.subr.mxu0 0.0
    %1602 = vmatpush1.msra.mxu0 0.0
    %1603 = vmatprep.subr.mxu0 0.0
    %1604 = vmatpush1.msra.mxu0 0.0
    %1605 = vmatprep.subr.mxu0 0.0
    %1606 = vmatpush1.msra.mxu0 0.0
    %1607 = vmatprep.subr.mxu0 0.0
    %1608 = vmatpush1.msra.mxu0 0.0
    %1609 = vmatprep.subr.mxu0 0.0
    %1610 = vmatpush1.msra.mxu0 0.0
    %1611 = vmatprep.subr.mxu0 0.0
    %1612 = vmatpush1.msra.mxu0 0.0
    %1613 = vmatprep.subr.mxu0 0.0
    %1614 = vmatpush1.msra.mxu0 0.0
    %1615 = vmatprep.subr.mxu0 0.0
    %1616 = vmatpush1.msra.mxu0 0.0
    %1617 = vmatprep.subr.mxu0 0.0
    %1618 = vmatpush1.msra.mxu0 0.0
    %1619 = vmatprep.subr.mxu0 0.0
    %1620 = vmatpush1.msra.mxu0 0.0
    %1621 = vmatprep.subr.mxu0 0.0
    %1622 = vmatpush1.msra.mxu0 0.0
    %1623 = vmatprep.subr.mxu0 0.0
    %1624 = vmatpush1.msra.mxu0 0.0
    %1625 = vmatprep.subr.mxu0 0.0
    %1626 = vmatpush1.msra.mxu0 0.0
    %1627 = vmatprep.mubr.f32.mxu0 0.0
    %1628 = vmatmul.mubr.f32.gmra.mrb[0].mxu0 %v1558
    %v1629 = vpop.f32.mrb[0].mxu0
    %v1630 = vadd.f32 %v1555, %v1629
    %v1631 = vpop.f32.mrb[0].mxu0
    %1632 = vmatprep.mubr.f32.mxu0 0.0
    %1633 = vmatmul.mubr.f32.gmra.mrb[0].mxu0 %v1561
    %v1634 = vpop.f32.mrb[0].mxu0
    %v1635 = vadd.f32 %v1555, %v1634
    %v1636 = vpop.f32.mrb[0].mxu0
    %1637 = vdwg.mxu0
    %1638 = vst.msk [vmem:[#allocation8] sm:$0xff] %vm1513, %v1630
    %1639 = vst.msk [vmem:[#allocation8 + $0x8] sm:$0xff] %vm1513, %v1635
    // Predicated region
    $region34: #{tpu_custom_call.1} parent=1 // pred_check
      _
    $region35: #{tpu_custom_call.1} parent=1 // pred_check_branch
      %1641 = sbr.rel (0) target = $region37
    $region36: #{tpu_custom_call.1} parent=1 // pred_region
      %s1643 = ssub.s32 256, 256
      %1644 = vsyncadd [#allocation4], %s1643
      %s1645 = sshll.u32 [#allocation8], 4
      %s1646 = int_to_ptr.vmem [resolvable:$true] %s1645
      %1651 = dma.vmem_to_hbm [thread:$0]  %s1646, 256, %s5, [#allocation4], 128, 128, 8
    $region37: #{tpu_custom_call.1} parent=1 // pred_fallthru
      _
    // Predicated region
    $region38: #{tpu_custom_call.1} parent=1 // pred_check
      _
    $region39: #{tpu_custom_call.1} parent=1 // pred_check_branch
      %1653 = sbr.rel (0) target = $region41
    $region40: #{tpu_custom_call.1} parent=1 // pred_region
      %s1655 = ssub.s32 256, 256
      %1656 = vsyncadd [#allocation10], %s1655
      %s1657 = sshll.u32 [#allocation9], 4
      %s1658 = int_to_ptr.vmem [resolvable:$true] %s1657
      %1663 = dma.vmem_to_hbm [thread:$0]  %s1658, 256, %s6, [#allocation10], 128, 128, 8
    $region41: #{tpu_custom_call.1} parent=1 // pred_fallthru
      _
    // Predicated region
    $region42: #{tpu_custom_call.1} parent=1 // pred_check
      _
    $region43: #{tpu_custom_call.1} parent=1 // pred_check_branch
      %1665 = sbr.rel (0) target = $region45
    $region44: #{tpu_custom_call.1} parent=1 // pred_region
      %1666 = dma.done [#allocation4], 256
    $region45: #{tpu_custom_call.1} parent=1 // pred_fallthru
      _
    // Predicated region
    $region46: #{tpu_custom_call.1} parent=1 // pred_check
      _
    $region47: #{tpu_custom_call.1} parent=1 // pred_check_branch
      %1668 = sbr.rel (0) target = $region49
    $region48: #{tpu_custom_call.1} parent=1 // pred_region
      %1669 = dma.done [#allocation10], 256
    $region49: #{tpu_custom_call.1} parent=1 // pred_fallthru
      _
    %1670 = vsyncpa [#allocation3], 1
    %1671 = vsyncpa [#allocation6], 1
    %1672 = vsyncpa [#allocation4], 1
    %1673 = vsyncpa [#allocation10], 1

</llo_original>
